<compile_context>
chip_gen: v6e
topology: v6e:2x2x1
jax: 0.10.0
libtpu: 0.0.40
codegen_flags: <defaults>
</compile_context>

<pallas_src>
import jax
import jax.numpy as jnp
from jax.experimental import pallas as pl
from jax.experimental.pallas import tpu as pltpu

EPS = 1e-5


def _bn_kernel(x_ref, gamma_ref, beta_ref, o_ref):
    # x_ref: (Cb, M) block in VMEM; gamma_ref / beta_ref: (Cb, 1)
    x = x_ref[...].astype(jnp.float32)
    m = x.shape[1]
    inv_m = jnp.float32(1.0 / m)

    # Single-pass stats: E[x] and E[x^2] (biased variance, which is what
    # PyTorch uses to normalize in training mode). Avoids a second full pass
    # over x for (x - mean)**2.
    s1 = jnp.sum(x, axis=1, keepdims=True)        # (Cb, 1)  XLU reduce
    s2 = jnp.sum(x * x, axis=1, keepdims=True)    # (Cb, 1)  VPU mul + XLU reduce
    mean = s1 * inv_m
    var = s2 * inv_m - mean * mean
    inv_std = jax.lax.rsqrt(var + EPS)            # EUP

    # Fold affine into per-channel scale/bias: y = x*scale + bias
    scale = gamma_ref[...].astype(jnp.float32) * inv_std      # (Cb, 1)
    bias = beta_ref[...].astype(jnp.float32) - mean * scale   # (Cb, 1)
    o_ref[...] = (x * scale + bias).astype(o_ref.dtype)       # VPU sweep


def batchnorm2d_pallas(x_nchw, gamma, beta):
    """x_nchw: (N, C, H, W); gamma, beta: (C,). Training-mode BN forward."""
    N, C, H, W = x_nchw.shape
    M = N * H * W

    if N == 1:
        # Pure view: NCHW with N==1 is already channel-major (C, H*W).
        x2d = x_nchw.reshape(C, M)
    else:
        # General case needs a channel-major layout (one transpose pass in XLA).
        x2d = jnp.transpose(x_nchw, (1, 0, 2, 3)).reshape(C, M)

    gamma2d = gamma.reshape(C, 1)
    beta2d = beta.reshape(C, 1)

    # Per-channel stats => channel blocks are fully independent (no cross-block
    # reduction). Two blocks so a v7x megacore can split them; each block
    # (624, 49) f32 ~= 122 KB, far under the VMEM limit even double-buffered.
    n_blocks = 2 if (C % 2 == 0 and (C // 2) % 8 == 0) else 1
    cb = C // n_blocks

    out2d = pl.pallas_call(
        _bn_kernel,
        out_shape=jax.ShapeDtypeStruct((C, M), x_nchw.dtype),
        grid_spec=pltpu.PrefetchScalarGridSpec(
            num_scalar_prefetch=0,
            grid=(n_blocks,),
            in_specs=[
                pl.BlockSpec((cb, M), lambda i: (i, 0)),
                pl.BlockSpec((cb, 1), lambda i: (i, 0)),
                pl.BlockSpec((cb, 1), lambda i: (i, 0)),
            ],
            out_specs=pl.BlockSpec((cb, M), lambda i: (i, 0)),
        ),
        compiler_params=pltpu.CompilerParams(
            dimension_semantics=("parallel",),
        ),
    )(x2d, gamma2d, beta2d)

    if N == 1:
        return out2d.reshape(N, C, H, W)
    return jnp.transpose(out2d.reshape(C, N, H, W), (1, 0, 2, 3))


def batchnorm2d_ref(x_nchw, gamma, beta):
    mean = jnp.mean(x_nchw, axis=(0, 2, 3), keepdims=True)
    var = jnp.mean((x_nchw - mean) ** 2, axis=(0, 2, 3), keepdims=True)
    g = gamma.reshape(1, -1, 1, 1)
    b = beta.reshape(1, -1, 1, 1)
    return (x_nchw - mean) * jax.lax.rsqrt(var + EPS) * g + b


if __name__ == "__main__":
    # Shapes from the module: x306 = randn([1, 1248, 7, 7]), BatchNorm2d(1248)
    N, C, H, W = 1, 1248, 7, 7
    key = jax.random.PRNGKey(0)
    kx, kg, kb = jax.random.split(key, 3)

    x = jax.random.normal(kx, (N, C, H, W), dtype=jnp.float32)
    # PyTorch default init is weight=1, bias=0; perturb so the affine path is
    # actually exercised.
    gamma = 1.0 + 0.1 * jax.random.normal(kg, (C,), dtype=jnp.float32)
    beta = 0.1 * jax.random.normal(kb, (C,), dtype=jnp.float32)

    out = batchnorm2d_pallas(x, gamma, beta)
    out = jax.block_until_ready(out)

    ref = batchnorm2d_ref(x, gamma, beta)
    assert out.shape == (N, C, H, W)
    assert jnp.allclose(out, ref, atol=1e-4, rtol=1e-4), "mismatch vs reference"

    # TODO(synk): running_mean/running_var momentum updates (training-mode side
    # effects; PyTorch uses unbiased variance there) are not materialized; they
    # do not affect the forward output.
    print("KERNEL_OK")
</pallas_src>

<mosaic_0001>
module attributes {stable_mosaic.version = 11 : i64} {
  func.func @_bn_kernel(%arg0: i32, %arg1: memref<624x49xf32, #tpu.memory_space<vmem>>, %arg2: memref<624x1xf32, #tpu.memory_space<vmem>>, %arg3: memref<624x1xf32, #tpu.memory_space<vmem>>, %arg4: memref<624x49xf32, #tpu.memory_space<vmem>>) attributes {dimension_semantics = [#tpu.dimension_semantics<parallel>], iteration_bounds = array<i64: 2>, scalar_prefetch = 0 : i64, scratch_operands = 0 : i64, tpu.core_type = #tpu.core_type<tc>, window_params = [{transform_indices = @transform_0, window_bounds = array<i64: 624, 49>}, {transform_indices = @transform_1, window_bounds = array<i64: 624, 1>}, {transform_indices = @transform_2, window_bounds = array<i64: 624, 1>}, {transform_indices = @transform_3, window_bounds = array<i64: 624, 49>}]} {
    %c0 = arith.constant 0 : index
    %c0_0 = arith.constant 0 : index
    %0 = vector.load %arg1[%c0, %c0_0] : memref<624x49xf32, #tpu.memory_space<vmem>>, vector<624x49xf32>
    %cst = arith.constant dense<0.000000e+00> : vector<624xf32>
    %1 = vector.multi_reduction <add>, %0, %cst [1] : vector<624x49xf32> to vector<624xf32>
    %2 = vector.shape_cast %1 : vector<624xf32> to vector<624x1xf32>
    %3 = arith.mulf %0, %0 : vector<624x49xf32>
    %cst_1 = arith.constant dense<0.000000e+00> : vector<624xf32>
    %4 = vector.multi_reduction <add>, %3, %cst_1 [1] : vector<624x49xf32> to vector<624xf32>
    %5 = vector.shape_cast %4 : vector<624xf32> to vector<624x1xf32>
    %cst_2 = arith.constant 0.0204081628 : f32
    %6 = vector.broadcast %cst_2 : f32 to vector<624x1xf32>
    %7 = arith.mulf %2, %6 : vector<624x1xf32>
    %cst_3 = arith.constant 0.0204081628 : f32
    %8 = vector.broadcast %cst_3 : f32 to vector<624x1xf32>
    %9 = arith.mulf %5, %8 : vector<624x1xf32>
    %10 = arith.mulf %7, %7 : vector<624x1xf32>
    %11 = arith.subf %9, %10 : vector<624x1xf32>
    %cst_4 = arith.constant 9.99999974E-6 : f32
    %12 = vector.broadcast %cst_4 : f32 to vector<624x1xf32>
    %13 = arith.addf %11, %12 : vector<624x1xf32>
    %14 = math.rsqrt %13 : vector<624x1xf32>
    %c0_5 = arith.constant 0 : index
    %c0_6 = arith.constant 0 : index
    %15 = vector.load %arg2[%c0_5, %c0_6] : memref<624x1xf32, #tpu.memory_space<vmem>>, vector<624x1xf32>
    %16 = arith.mulf %15, %14 : vector<624x1xf32>
    %c0_7 = arith.constant 0 : index
    %c0_8 = arith.constant 0 : index
    %17 = vector.load %arg3[%c0_7, %c0_8] : memref<624x1xf32, #tpu.memory_space<vmem>>, vector<624x1xf32>
    %18 = arith.mulf %7, %16 : vector<624x1xf32>
    %19 = arith.subf %17, %18 : vector<624x1xf32>
    %20 = vector.broadcast %16 : vector<624x1xf32> to vector<624x49xf32>
    %21 = arith.mulf %0, %20 : vector<624x49xf32>
    %22 = vector.broadcast %19 : vector<624x1xf32> to vector<624x49xf32>
    %23 = arith.addf %21, %22 : vector<624x49xf32>
    %c0_9 = arith.constant 0 : index
    %c0_10 = arith.constant 0 : index
    %24 = vector.load %arg4[%c0_9, %c0_10] : memref<624x49xf32, #tpu.memory_space<vmem>>, vector<624x49xf32>
    tpu.vector_store %arg4[%c0_9, %c0_10], %23 {strides = array<i32>} : memref<624x49xf32, #tpu.memory_space<vmem>>, vector<624x49xf32>,
    return
  }
  func.func @transform_0(%arg0: i32) -> (i32, i32) {
    %c0_i32 = arith.constant 0 : i32
    %c0_i32_0 = arith.constant 0 : i32
    return %arg0, %c0_i32 : i32, i32
  }
  func.func @transform_1(%arg0: i32) -> (i32, i32) {
    %c0_i32 = arith.constant 0 : i32
    %c0_i32_0 = arith.constant 0 : i32
    return %arg0, %c0_i32 : i32, i32
  }
  func.func @transform_2(%arg0: i32) -> (i32, i32) {
    %c0_i32 = arith.constant 0 : i32
    %c0_i32_0 = arith.constant 0 : i32
    return %arg0, %c0_i32 : i32, i32
  }
  func.func @transform_3(%arg0: i32) -> (i32, i32) {
    %c0_i32 = arith.constant 0 : i32
    %c0_i32_0 = arith.constant 0 : i32
    return %arg0, %c0_i32 : i32, i32
  }
}

</mosaic_0001>

<llo_original>
// kernel: tpu_custom_call.1
$region0: #{tpu_custom_call.1}
  #allocation0 [shape = 'u32[]', space=smem, size = 0x4, offset = 0x4, fixed_abs, tag = 'smem constant byte address 0x4 - core index']
  #allocation1 [shape = 'u32[144,128]{1,0:T(1,128)}', space=vmem, size = 0x12000, scoped, tag = 'internal scratch']
  %s0 = inlined_call_operand.vmem [shape: f32[1248,49], index: 0, kind: input, shape index: {}]
  %s1 = inlined_call_operand.vmem [shape: f32[1248,1], index: 1, kind: input, shape index: {}]
  %s2 = inlined_call_operand.vmem [shape: f32[1248,1], index: 2, kind: input, shape index: {}]
  %s3 = inlined_call_operand.vmem [shape: f32[1248,49], index: 3, kind: output, shape index: {}]
  %s4 = sld [smem:[#allocation0]]
  $region45: #{tpu_custom_call.1} parent=0
    _
  %s6 = ssub.s32 1, %s4
  %s7 = scalar_select 0, %s6, %s4
  loop: start=0, step=1, limit=4
  $region2: #{tpu_custom_call.1} parent=0 // loop_pre_header
    _
  $region3: #{tpu_custom_call.1} parent=0 // loop_header
    %s9 = sphi 0, %s13
    %p10 = scmp.ge.s32.totalorder %s9, 4
    %s19 = sphi 0, %s21
    %s22 = sphi 0, %s19
    %s23 = sphi 0, %s22
    %s39 = sphi 0, %s23
    %s45 = sphi 0, %s47
    %s48 = sphi 0, %s45
    %s49 = sphi 0, %s48
    %s65 = sphi 0, %s49
    %s71 = sphi 0, %s73
    %s74 = sphi 0, %s71
    %s75 = sphi 0, %s74
    %s91 = sphi 0, %s75
    %s97 = sphi 0, %s99
    %s100 = sphi 0, %s97
    %s101 = sphi 0, %s100
    %s117 = sphi 0, %s101
  $region4: #{tpu_custom_call.1} parent=0 // loop_header_branch
    %12 = sbr.rel (%p10) target = $region8
  $region5: #{tpu_custom_call.1} parent=0 // loop_body
    %s14 = ssub.s32 %s9, 1
    %s15 = ssub.s32 %s9, 2
    %s16 = sadd.s32 %s9, 1
    %s17 = ssub.s32 %s9, %s16
    %p18 = scmp.eq.s32.totalorder %s17, 0
    %s20 = sadd.s32 %s19, 1
    %s21 = scalar_select %p18, %s19, %s20
    %p24 = pneg %p18
    %p25 = scmp.eq.s32.totalorder %s9, 1
    %p26 = por %p24, %p25
    %p27 = scmp.ne.s32.totalorder %s19, %s22
    %p28 = scmp.eq.s32.totalorder %s9, 0
    %p29 = por %p27, %p28
    %p30 = scmp.ne.s32.totalorder %s19, %s22
    %p31 = scmp.eq.s32.totalorder %s14, 1
    %p32 = por %p30, %p31
    %p33 = scmp.ne.s32.totalorder %s22, %s23
    %p34 = scmp.eq.s32.totalorder %s14, 0
    %p35 = por %p33, %p34
    %p36 = scmp.ne.s32.totalorder %s22, %s23
    %p37 = scmp.eq.s32.totalorder %s15, 1
    %p38 = por %p36, %p37
    %p40 = scmp.ne.s32.totalorder %s23, %s39
    %p41 = scmp.eq.s32.totalorder %s15, 0
    %p42 = por %p40, %p41
    %s43 = ssub.s32 %s9, %s16
    %p44 = scmp.eq.s32.totalorder %s43, 0
    %s46 = sadd.s32 %s45, 1
    %s47 = scalar_select %p44, %s45, %s46
    %p50 = pneg %p44
    %p51 = scmp.eq.s32.totalorder %s9, 1
    %p52 = por %p50, %p51
    %p53 = scmp.ne.s32.totalorder %s45, %s48
    %p54 = scmp.eq.s32.totalorder %s9, 0
    %p55 = por %p53, %p54
    %p56 = scmp.ne.s32.totalorder %s45, %s48
    %p57 = scmp.eq.s32.totalorder %s14, 1
    %p58 = por %p56, %p57
    %p59 = scmp.ne.s32.totalorder %s48, %s49
    %p60 = scmp.eq.s32.totalorder %s14, 0
    %p61 = por %p59, %p60
    %p62 = scmp.ne.s32.totalorder %s48, %s49
    %p63 = scmp.eq.s32.totalorder %s15, 1
    %p64 = por %p62, %p63
    %p66 = scmp.ne.s32.totalorder %s49, %s65
    %p67 = scmp.eq.s32.totalorder %s15, 0
    %p68 = por %p66, %p67
    %s69 = ssub.s32 %s9, %s16
    %p70 = scmp.eq.s32.totalorder %s69, 0
    %s72 = sadd.s32 %s71, 1
    %s73 = scalar_select %p70, %s71, %s72
    %p76 = pneg %p70
    %p77 = scmp.eq.s32.totalorder %s9, 1
    %p78 = por %p76, %p77
    %p79 = scmp.ne.s32.totalorder %s71, %s74
    %p80 = scmp.eq.s32.totalorder %s9, 0
    %p81 = por %p79, %p80
    %p82 = scmp.ne.s32.totalorder %s71, %s74
    %p83 = scmp.eq.s32.totalorder %s14, 1
    %p84 = por %p82, %p83
    %p85 = scmp.ne.s32.totalorder %s74, %s75
    %p86 = scmp.eq.s32.totalorder %s14, 0
    %p87 = por %p85, %p86
    %p88 = scmp.ne.s32.totalorder %s74, %s75
    %p89 = scmp.eq.s32.totalorder %s15, 1
    %p90 = por %p88, %p89
    %p92 = scmp.ne.s32.totalorder %s75, %s91
    %p93 = scmp.eq.s32.totalorder %s15, 0
    %p94 = por %p92, %p93
    %s95 = ssub.s32 %s9, %s16
    %p96 = scmp.eq.s32.totalorder %s95, 0
    %s98 = sadd.s32 %s97, 1
    %s99 = scalar_select %p96, %s97, %s98
    %p102 = pneg %p96
    %p103 = scmp.eq.s32.totalorder %s9, 1
    %p104 = por %p102, %p103
    %p105 = scmp.ne.s32.totalorder %s97, %s100
    %p106 = scmp.eq.s32.totalorder %s9, 0
    %p107 = por %p105, %p106
    %p108 = scmp.ne.s32.totalorder %s97, %s100
    %p109 = scmp.eq.s32.totalorder %s14, 1
    %p110 = por %p108, %p109
    %p111 = scmp.ne.s32.totalorder %s100, %s101
    %p112 = scmp.eq.s32.totalorder %s14, 0
    %p113 = por %p111, %p112
    %p114 = scmp.ne.s32.totalorder %s100, %s101
    %p115 = scmp.eq.s32.totalorder %s15, 1
    %p116 = por %p114, %p115
    %p118 = scmp.ne.s32.totalorder %s101, %s117
    %p119 = scmp.eq.s32.totalorder %s15, 0
    %p120 = por %p118, %p119
    %p121 = scmp.le.s32.totalorder 1, %s9
    %p122 = scmp.lt.s32.totalorder %s9, 3
    %p123 = pnand %p121, %p122
    %p124 = pneg %p123
    // Predicated region
    $region9: #{tpu_custom_call.1} parent=5 // pred_check
      _
    $region10: #{tpu_custom_call.1} parent=5 // pred_check_branch
      %126 = sbr.rel (%p123) target = $region12
    $region11: #{tpu_custom_call.1} parent=5 // pred_region
      %s127 = ssub.s32 %s9, 1
    $region12: #{tpu_custom_call.1} parent=5 // pred_fallthru
      _
    %p128 = scmp.lt.s32.totalorder %s9, 2
    // Predicated region
    $region13: #{tpu_custom_call.1} parent=5 // pred_check
      %p129 = pneg %p128
    $region14: #{tpu_custom_call.1} parent=5 // pred_check_branch
      %131 = sbr.rel (%p129) target = $region16
    $region15: #{tpu_custom_call.1} parent=5 // pred_region
      // Predicated region
      $region17: #{tpu_custom_call.1} parent=15 // pred_check
        %p132 = pneg %p29
      $region18: #{tpu_custom_call.1} parent=15 // pred_check_branch
        %134 = sbr.rel (%p132) target = $region20
      $region19: #{tpu_custom_call.1} parent=15 // pred_region
        %s135 = smul.u32 78, %s9
        %p136 = scmp.lt.s32.totalorder %s135, 155
        %s137 = scalar_select %p136, %s135, 155
        %s138 = smul.addr %s137, 8
        %s139 = scalar_lea.vmem %s0, %s138
        %s140 = smul.u32 78, %s9
      $region20: #{tpu_custom_call.1} parent=15 // pred_fallthru
        _
      // Predicated region
      $region21: #{tpu_custom_call.1} parent=15 // pred_check
        %p141 = pneg %p55
      $region22: #{tpu_custom_call.1} parent=15 // pred_check_branch
        %143 = sbr.rel (%p141) target = $region24
      $region23: #{tpu_custom_call.1} parent=15 // pred_region
        %s144 = smul.u32 78, %s9
        %p145 = scmp.lt.s32.totalorder %s144, 155
        %s146 = scalar_select %p145, %s144, 155
        %s147 = smul.addr %s146, 8
        %s148 = scalar_lea.vmem %s1, %s147
        %s149 = smul.u32 78, %s9
      $region24: #{tpu_custom_call.1} parent=15 // pred_fallthru
        _
      // Predicated region
      $region25: #{tpu_custom_call.1} parent=15 // pred_check
        %p150 = pneg %p81
      $region26: #{tpu_custom_call.1} parent=15 // pred_check_branch
        %152 = sbr.rel (%p150) target = $region28
      $region27: #{tpu_custom_call.1} parent=15 // pred_region
        %s153 = smul.u32 78, %s9
        %p154 = scmp.lt.s32.totalorder %s153, 155
        %s155 = scalar_select %p154, %s153, 155
        %s156 = smul.addr %s155, 8
        %s157 = scalar_lea.vmem %s2, %s156
        %s158 = smul.u32 78, %s9
      $region28: #{tpu_custom_call.1} parent=15 // pred_fallthru
        _
    $region16: #{tpu_custom_call.1} parent=5 // pred_fallthru
      _
    %p159 = scmp.le.s32.totalorder 1, %s9
    %p160 = scmp.lt.s32.totalorder %s9, 3
    %p161 = pnand %p159, %p160
    %p162 = pneg %p161
    // Predicated region
    $region29: #{tpu_custom_call.1} parent=5 // pred_check
      _
    $region30: #{tpu_custom_call.1} parent=5 // pred_check_branch
      %164 = sbr.rel (%p161) target = $region32
    $region31: #{tpu_custom_call.1} parent=5 // pred_region
      %s165 = ssub.s32 %s9, 1
      %s166 = smul.u32 78, %s14
      %p167 = scmp.lt.s32.totalorder %s166, 155
      %s168 = scalar_select %p167, %s166, 155
      %s169 = smul.addr %s168, 8
      %s170 = scalar_lea.vmem %s0, %s169
      %p171 = pneg %p35
      %p172 = pneg %p32
      %s173 = smul.u32 78, %s14
      %p174 = scmp.lt.s32.totalorder %s173, 155
      %s175 = scalar_select %p174, %s173, 155
      %s176 = smul.addr %s175, 8
      %s177 = scalar_lea.vmem %s1, %s176
      %p178 = pneg %p61
      %p179 = pneg %p58
      %s180 = smul.u32 78, %s14
      %p181 = scmp.lt.s32.totalorder %s180, 155
      %s182 = scalar_select %p181, %s180, 155
      %s183 = smul.addr %s182, 8
      %s184 = scalar_lea.vmem %s2, %s183
      %p185 = pneg %p87
      %p186 = pneg %p84
      %p187 = pneg %p113
      %p188 = pneg %p110
      %s189 = smul.u32 78, %s14
      %p190 = scmp.lt.s32.totalorder %s189, 155
      %s191 = scalar_select %p190, %s189, 155
      %s192 = smul.addr %s191, 8
      %s193 = scalar_lea.vmem %s3, %s192
      %s194 = smul.u32 78, %s14
      %p195 = scmp.lt.s32.totalorder %s194, 155
      %s196 = scalar_select %p195, %s194, 155
      %s197 = smul.addr %s196, 8
      %s198 = scalar_lea.vmem %s0, %s197
      %s199 = smul.u32 78, %s14
      %s200 = smul.u32 78, %s14
      %p201 = scmp.lt.s32.totalorder %s200, 155
      %s202 = scalar_select %p201, %s200, 155
      %s203 = smul.addr %s202, 8
      %s204 = scalar_lea.vmem %s1, %s203
      %s205 = smul.u32 78, %s14
      %s206 = smul.u32 78, %s14
      %p207 = scmp.lt.s32.totalorder %s206, 155
      %s208 = scalar_select %p207, %s206, 155
      %s209 = smul.addr %s208, 8
      %s210 = scalar_lea.vmem %s2, %s209
      %s211 = smul.u32 78, %s14
      %s212 = smul.u32 78, %s14
      %p213 = scmp.lt.s32.totalorder %s212, 155
      %s214 = scalar_select %p213, %s212, 155
      %s215 = smul.addr %s214, 8
      %s216 = scalar_lea.vmem %s3, %s215
      %s217 = smul.u32 78, %s14
      %v218 = vld [vmem:[%s198] sm:$0xff]
      %v219 = vld [vmem:[%s198 + $0x8] sm:$0xff]
      %v220 = vld [vmem:[%s198 + $0x10] sm:$0xff]
      %v221 = vld [vmem:[%s198 + $0x18] sm:$0xff]
      %v222 = vld [vmem:[%s198 + $0x20] sm:$0xff]
      %v223 = vld [vmem:[%s198 + $0x28] sm:$0xff]
      %v224 = vld [vmem:[%s198 + $0x30] sm:$0xff]
      %v225 = vld [vmem:[%s198 + $0x38] sm:$0xff]
      %v226 = vld [vmem:[%s198 + $0x40] sm:$0xff]
      %v227 = vld [vmem:[%s198 + $0x48] sm:$0xff]
      %v228 = vld [vmem:[%s198 + $0x50] sm:$0xff]
      %v229 = vld [vmem:[%s198 + $0x58] sm:$0xff]
      %v230 = vld [vmem:[%s198 + $0x60] sm:$0xff]
      %v231 = vld [vmem:[%s198 + $0x68] sm:$0xff]
      %v232 = vld [vmem:[%s198 + $0x70] sm:$0xff]
      %v233 = vld [vmem:[%s198 + $0x78] sm:$0xff]
      %v234 = vld [vmem:[%s198 + $0x80] sm:$0xff]
      %v235 = vld [vmem:[%s198 + $0x88] sm:$0xff]
      %v236 = vld [vmem:[%s198 + $0x90] sm:$0xff]
      %v237 = vld [vmem:[%s198 + $0x98] sm:$0xff]
      %v238 = vld [vmem:[%s198 + $0xa0] sm:$0xff]
      %v239 = vld [vmem:[%s198 + $0xa8] sm:$0xff]
      %v240 = vld [vmem:[%s198 + $0xb0] sm:$0xff]
      %v241 = vld [vmem:[%s198 + $0xb8] sm:$0xff]
      %v242 = vld [vmem:[%s198 + $0xc0] sm:$0xff]
      %v243 = vld [vmem:[%s198 + $0xc8] sm:$0xff]
      %v244 = vld [vmem:[%s198 + $0xd0] sm:$0xff]
      %v245 = vld [vmem:[%s198 + $0xd8] sm:$0xff]
      %v246 = vld [vmem:[%s198 + $0xe0] sm:$0xff]
      %v247 = vld [vmem:[%s198 + $0xe8] sm:$0xff]
      %v248 = vld [vmem:[%s198 + $0xf0] sm:$0xff]
      %v249 = vld [vmem:[%s198 + $0xf8] sm:$0xff]
      %v250 = vld [vmem:[%s198 + $0x100] sm:$0xff]
      %v251 = vld [vmem:[%s198 + $0x108] sm:$0xff]
      %v252 = vld [vmem:[%s198 + $0x110] sm:$0xff]
      %v253 = vld [vmem:[%s198 + $0x118] sm:$0xff]
      %v254 = vld [vmem:[%s198 + $0x120] sm:$0xff]
      %v255 = vld [vmem:[%s198 + $0x128] sm:$0xff]
      %v256 = vld [vmem:[%s198 + $0x130] sm:$0xff]
      %v257 = vld [vmem:[%s198 + $0x138] sm:$0xff]
      %v258 = vld [vmem:[%s198 + $0x140] sm:$0xff]
      %v259 = vld [vmem:[%s198 + $0x148] sm:$0xff]
      %v260 = vld [vmem:[%s198 + $0x150] sm:$0xff]
      %v261 = vld [vmem:[%s198 + $0x158] sm:$0xff]
      %v262 = vld [vmem:[%s198 + $0x160] sm:$0xff]
      %v263 = vld [vmem:[%s198 + $0x168] sm:$0xff]
      %v264 = vld [vmem:[%s198 + $0x170] sm:$0xff]
      %v265 = vld [vmem:[%s198 + $0x178] sm:$0xff]
      %v266 = vld [vmem:[%s198 + $0x180] sm:$0xff]
      %v267 = vld [vmem:[%s198 + $0x188] sm:$0xff]
      %v268 = vld [vmem:[%s198 + $0x190] sm:$0xff]
      %v269 = vld [vmem:[%s198 + $0x198] sm:$0xff]
      %v270 = vld [vmem:[%s198 + $0x1a0] sm:$0xff]
      %v271 = vld [vmem:[%s198 + $0x1a8] sm:$0xff]
      %v272 = vld [vmem:[%s198 + $0x1b0] sm:$0xff]
      %v273 = vld [vmem:[%s198 + $0x1b8] sm:$0xff]
      %v274 = vld [vmem:[%s198 + $0x1c0] sm:$0xff]
      %v275 = vld [vmem:[%s198 + $0x1c8] sm:$0xff]
      %v276 = vld [vmem:[%s198 + $0x1d0] sm:$0xff]
      %v277 = vld [vmem:[%s198 + $0x1d8] sm:$0xff]
      %v278 = vld [vmem:[%s198 + $0x1e0] sm:$0xff]
      %v279 = vld [vmem:[%s198 + $0x1e8] sm:$0xff]
      %v280 = vld [vmem:[%s198 + $0x1f0] sm:$0xff]
      %v281 = vld [vmem:[%s198 + $0x1f8] sm:$0xff]
      %v282 = vld [vmem:[%s198 + $0x200] sm:$0xff]
      %v283 = vld [vmem:[%s198 + $0x208] sm:$0xff]
      %v284 = vld [vmem:[%s198 + $0x210] sm:$0xff]
      %v285 = vld [vmem:[%s198 + $0x218] sm:$0xff]
      %v286 = vld [vmem:[%s198 + $0x220] sm:$0xff]
      %v287 = vld [vmem:[%s198 + $0x228] sm:$0xff]
      %v288 = vld [vmem:[%s198 + $0x230] sm:$0xff]
      %v289 = vld [vmem:[%s198 + $0x238] sm:$0xff]
      %v290 = vld [vmem:[%s198 + $0x240] sm:$0xff]
      %v291 = vld [vmem:[%s198 + $0x248] sm:$0xff]
      %v292 = vld [vmem:[%s198 + $0x250] sm:$0xff]
      %v293 = vld [vmem:[%s198 + $0x258] sm:$0xff]
      %v294 = vld [vmem:[%s198 + $0x260] sm:$0xff]
      %v295 = vld [vmem:[%s198 + $0x268] sm:$0xff]
      %vm296 = vcmask 400384
      %v297 = vsel %vm296, %v218, 0.0
      %298 = vadd.xlane.f32.xlu0 %v297
      %v299 = vpop.xlane.xlu0 %298
      %v300 = vsel %vm296, %v219, 0.0
      %301 = vadd.xlane.f32.xlu0 %v300
      %v302 = vpop.xlane.xlu0 %301
      %v303 = vsel %vm296, %v220, 0.0
      %304 = vadd.xlane.f32.xlu0 %v303
      %v305 = vpop.xlane.xlu0 %304
      %v306 = vsel %vm296, %v221, 0.0
      %307 = vadd.xlane.f32.xlu0 %v306
      %v308 = vpop.xlane.xlu0 %307
      %v309 = vsel %vm296, %v222, 0.0
      %310 = vadd.xlane.f32.xlu0 %v309
      %v311 = vpop.xlane.xlu0 %310
      %v312 = vsel %vm296, %v223, 0.0
      %313 = vadd.xlane.f32.xlu0 %v312
      %v314 = vpop.xlane.xlu0 %313
      %v315 = vsel %vm296, %v224, 0.0
      %316 = vadd.xlane.f32.xlu0 %v315
      %v317 = vpop.xlane.xlu0 %316
      %v318 = vsel %vm296, %v225, 0.0
      %319 = vadd.xlane.f32.xlu0 %v318
      %v320 = vpop.xlane.xlu0 %319
      %v321 = vsel %vm296, %v226, 0.0
      %322 = vadd.xlane.f32.xlu0 %v321
      %v323 = vpop.xlane.xlu0 %322
      %v324 = vsel %vm296, %v227, 0.0
      %325 = vadd.xlane.f32.xlu0 %v324
      %v326 = vpop.xlane.xlu0 %325
      %v327 = vsel %vm296, %v228, 0.0
      %328 = vadd.xlane.f32.xlu0 %v327
      %v329 = vpop.xlane.xlu0 %328
      %v330 = vsel %vm296, %v229, 0.0
      %331 = vadd.xlane.f32.xlu0 %v330
      %v332 = vpop.xlane.xlu0 %331
      %v333 = vsel %vm296, %v230, 0.0
      %334 = vadd.xlane.f32.xlu0 %v333
      %v335 = vpop.xlane.xlu0 %334
      %v336 = vsel %vm296, %v231, 0.0
      %337 = vadd.xlane.f32.xlu0 %v336
      %v338 = vpop.xlane.xlu0 %337
      %v339 = vsel %vm296, %v232, 0.0
      %340 = vadd.xlane.f32.xlu0 %v339
      %v341 = vpop.xlane.xlu0 %340
      %v342 = vsel %vm296, %v233, 0.0
      %343 = vadd.xlane.f32.xlu0 %v342
      %v344 = vpop.xlane.xlu0 %343
      %v345 = vsel %vm296, %v234, 0.0
      %346 = vadd.xlane.f32.xlu0 %v345
      %v347 = vpop.xlane.xlu0 %346
      %v348 = vsel %vm296, %v235, 0.0
      %349 = vadd.xlane.f32.xlu0 %v348
      %v350 = vpop.xlane.xlu0 %349
      %v351 = vsel %vm296, %v236, 0.0
      %352 = vadd.xlane.f32.xlu0 %v351
      %v353 = vpop.xlane.xlu0 %352
      %v354 = vsel %vm296, %v237, 0.0
      %355 = vadd.xlane.f32.xlu0 %v354
      %v356 = vpop.xlane.xlu0 %355
      %v357 = vsel %vm296, %v238, 0.0
      %358 = vadd.xlane.f32.xlu0 %v357
      %v359 = vpop.xlane.xlu0 %358
      %v360 = vsel %vm296, %v239, 0.0
      %361 = vadd.xlane.f32.xlu0 %v360
      %v362 = vpop.xlane.xlu0 %361
      %v363 = vsel %vm296, %v240, 0.0
      %364 = vadd.xlane.f32.xlu0 %v363
      %v365 = vpop.xlane.xlu0 %364
      %v366 = vsel %vm296, %v241, 0.0
      %367 = vadd.xlane.f32.xlu0 %v366
      %v368 = vpop.xlane.xlu0 %367
      %v369 = vsel %vm296, %v242, 0.0
      %370 = vadd.xlane.f32.xlu0 %v369
      %v371 = vpop.xlane.xlu0 %370
      %v372 = vsel %vm296, %v243, 0.0
      %373 = vadd.xlane.f32.xlu0 %v372
      %v374 = vpop.xlane.xlu0 %373
      %v375 = vsel %vm296, %v244, 0.0
      %376 = vadd.xlane.f32.xlu0 %v375
      %v377 = vpop.xlane.xlu0 %376
      %v378 = vsel %vm296, %v245, 0.0
      %379 = vadd.xlane.f32.xlu0 %v378
      %v380 = vpop.xlane.xlu0 %379
      %v381 = vsel %vm296, %v246, 0.0
      %382 = vadd.xlane.f32.xlu0 %v381
      %v383 = vpop.xlane.xlu0 %382
      %v384 = vsel %vm296, %v247, 0.0
      %385 = vadd.xlane.f32.xlu0 %v384
      %v386 = vpop.xlane.xlu0 %385
      %v387 = vsel %vm296, %v248, 0.0
      %388 = vadd.xlane.f32.xlu0 %v387
      %v389 = vpop.xlane.xlu0 %388
      %v390 = vsel %vm296, %v249, 0.0
      %391 = vadd.xlane.f32.xlu0 %v390
      %v392 = vpop.xlane.xlu0 %391
      %v393 = vsel %vm296, %v250, 0.0
      %394 = vadd.xlane.f32.xlu0 %v393
      %v395 = vpop.xlane.xlu0 %394
      %v396 = vsel %vm296, %v251, 0.0
      %397 = vadd.xlane.f32.xlu0 %v396
      %v398 = vpop.xlane.xlu0 %397
      %v399 = vsel %vm296, %v252, 0.0
      %400 = vadd.xlane.f32.xlu0 %v399
      %v401 = vpop.xlane.xlu0 %400
      %v402 = vsel %vm296, %v253, 0.0
      %403 = vadd.xlane.f32.xlu0 %v402
      %v404 = vpop.xlane.xlu0 %403
      %v405 = vsel %vm296, %v254, 0.0
      %406 = vadd.xlane.f32.xlu0 %v405
      %v407 = vpop.xlane.xlu0 %406
      %v408 = vsel %vm296, %v255, 0.0
      %409 = vadd.xlane.f32.xlu0 %v408
      %v410 = vpop.xlane.xlu0 %409
      %v411 = vsel %vm296, %v256, 0.0
      %412 = vadd.xlane.f32.xlu0 %v411
      %v413 = vpop.xlane.xlu0 %412
      %v414 = vsel %vm296, %v257, 0.0
      %415 = vadd.xlane.f32.xlu0 %v414
      %v416 = vpop.xlane.xlu0 %415
      %v417 = vsel %vm296, %v258, 0.0
      %418 = vadd.xlane.f32.xlu0 %v417
      %v419 = vpop.xlane.xlu0 %418
      %v420 = vsel %vm296, %v259, 0.0
      %421 = vadd.xlane.f32.xlu0 %v420
      %v422 = vpop.xlane.xlu0 %421
      %v423 = vsel %vm296, %v260, 0.0
      %424 = vadd.xlane.f32.xlu0 %v423
      %v425 = vpop.xlane.xlu0 %424
      %v426 = vsel %vm296, %v261, 0.0
      %427 = vadd.xlane.f32.xlu0 %v426
      %v428 = vpop.xlane.xlu0 %427
      %v429 = vsel %vm296, %v262, 0.0
      %430 = vadd.xlane.f32.xlu0 %v429
      %v431 = vpop.xlane.xlu0 %430
      %v432 = vsel %vm296, %v263, 0.0
      %433 = vadd.xlane.f32.xlu0 %v432
      %v434 = vpop.xlane.xlu0 %433
      %v435 = vsel %vm296, %v264, 0.0
      %436 = vadd.xlane.f32.xlu0 %v435
      %v437 = vpop.xlane.xlu0 %436
      %v438 = vsel %vm296, %v265, 0.0
      %439 = vadd.xlane.f32.xlu0 %v438
      %v440 = vpop.xlane.xlu0 %439
      %v441 = vsel %vm296, %v266, 0.0
      %442 = vadd.xlane.f32.xlu0 %v441
      %v443 = vpop.xlane.xlu0 %442
      %v444 = vsel %vm296, %v267, 0.0
      %445 = vadd.xlane.f32.xlu0 %v444
      %v446 = vpop.xlane.xlu0 %445
      %v447 = vsel %vm296, %v268, 0.0
      %448 = vadd.xlane.f32.xlu0 %v447
      %v449 = vpop.xlane.xlu0 %448
      %v450 = vsel %vm296, %v269, 0.0
      %451 = vadd.xlane.f32.xlu0 %v450
      %v452 = vpop.xlane.xlu0 %451
      %v453 = vsel %vm296, %v270, 0.0
      %454 = vadd.xlane.f32.xlu0 %v453
      %v455 = vpop.xlane.xlu0 %454
      %v456 = vsel %vm296, %v271, 0.0
      %457 = vadd.xlane.f32.xlu0 %v456
      %v458 = vpop.xlane.xlu0 %457
      %v459 = vsel %vm296, %v272, 0.0
      %460 = vadd.xlane.f32.xlu0 %v459
      %v461 = vpop.xlane.xlu0 %460
      %v462 = vsel %vm296, %v273, 0.0
      %463 = vadd.xlane.f32.xlu0 %v462
      %v464 = vpop.xlane.xlu0 %463
      %v465 = vsel %vm296, %v274, 0.0
      %466 = vadd.xlane.f32.xlu0 %v465
      %v467 = vpop.xlane.xlu0 %466
      %v468 = vsel %vm296, %v275, 0.0
      %469 = vadd.xlane.f32.xlu0 %v468
      %v470 = vpop.xlane.xlu0 %469
      %v471 = vsel %vm296, %v276, 0.0
      %472 = vadd.xlane.f32.xlu0 %v471
      %v473 = vpop.xlane.xlu0 %472
      %v474 = vsel %vm296, %v277, 0.0
      %475 = vadd.xlane.f32.xlu0 %v474
      %v476 = vpop.xlane.xlu0 %475
      %v477 = vsel %vm296, %v278, 0.0
      %478 = vadd.xlane.f32.xlu0 %v477
      %v479 = vpop.xlane.xlu0 %478
      %v480 = vsel %vm296, %v279, 0.0
      %481 = vadd.xlane.f32.xlu0 %v480
      %v482 = vpop.xlane.xlu0 %481
      %v483 = vsel %vm296, %v280, 0.0
      %484 = vadd.xlane.f32.xlu0 %v483
      %v485 = vpop.xlane.xlu0 %484
      %v486 = vsel %vm296, %v281, 0.0
      %487 = vadd.xlane.f32.xlu0 %v486
      %v488 = vpop.xlane.xlu0 %487
      %v489 = vsel %vm296, %v282, 0.0
      %490 = vadd.xlane.f32.xlu0 %v489
      %v491 = vpop.xlane.xlu0 %490
      %v492 = vsel %vm296, %v283, 0.0
      %493 = vadd.xlane.f32.xlu0 %v492
      %v494 = vpop.xlane.xlu0 %493
      %v495 = vsel %vm296, %v284, 0.0
      %496 = vadd.xlane.f32.xlu0 %v495
      %v497 = vpop.xlane.xlu0 %496
      %v498 = vsel %vm296, %v285, 0.0
      %499 = vadd.xlane.f32.xlu0 %v498
      %v500 = vpop.xlane.xlu0 %499
      %v501 = vsel %vm296, %v286, 0.0
      %502 = vadd.xlane.f32.xlu0 %v501
      %v503 = vpop.xlane.xlu0 %502
      %v504 = vsel %vm296, %v287, 0.0
      %505 = vadd.xlane.f32.xlu0 %v504
      %v506 = vpop.xlane.xlu0 %505
      %v507 = vsel %vm296, %v288, 0.0
      %508 = vadd.xlane.f32.xlu0 %v507
      %v509 = vpop.xlane.xlu0 %508
      %v510 = vsel %vm296, %v289, 0.0
      %511 = vadd.xlane.f32.xlu0 %v510
      %v512 = vpop.xlane.xlu0 %511
      %v513 = vsel %vm296, %v290, 0.0
      %514 = vadd.xlane.f32.xlu0 %v513
      %v515 = vpop.xlane.xlu0 %514
      %v516 = vsel %vm296, %v291, 0.0
      %517 = vadd.xlane.f32.xlu0 %v516
      %v518 = vpop.xlane.xlu0 %517
      %v519 = vsel %vm296, %v292, 0.0
      %520 = vadd.xlane.f32.xlu0 %v519
      %v521 = vpop.xlane.xlu0 %520
      %v522 = vsel %vm296, %v293, 0.0
      %523 = vadd.xlane.f32.xlu0 %v522
      %v524 = vpop.xlane.xlu0 %523
      %v525 = vsel %vm296, %v294, 0.0
      %526 = vadd.xlane.f32.xlu0 %v525
      %v527 = vpop.xlane.xlu0 %526
      %v528 = vsel %vm296, %v295, 0.0
      %529 = vadd.xlane.f32.xlu0 %v528
      %v530 = vpop.xlane.xlu0 %529
      %v531 = vmul.f32 %v218, %v218
      %v532 = vmul.f32 %v219, %v219
      %v533 = vmul.f32 %v220, %v220
      %v534 = vmul.f32 %v221, %v221
      %v535 = vmul.f32 %v222, %v222
      %v536 = vmul.f32 %v223, %v223
      %v537 = vmul.f32 %v224, %v224
      %v538 = vmul.f32 %v225, %v225
      %v539 = vmul.f32 %v226, %v226
      %v540 = vmul.f32 %v227, %v227
      %v541 = vmul.f32 %v228, %v228
      %v542 = vmul.f32 %v229, %v229
      %v543 = vmul.f32 %v230, %v230
      %v544 = vmul.f32 %v231, %v231
      %v545 = vmul.f32 %v232, %v232
      %v546 = vmul.f32 %v233, %v233
      %v547 = vmul.f32 %v234, %v234
      %v548 = vmul.f32 %v235, %v235
      %v549 = vmul.f32 %v236, %v236
      %v550 = vmul.f32 %v237, %v237
      %v551 = vmul.f32 %v238, %v238
      %v552 = vmul.f32 %v239, %v239
      %v553 = vmul.f32 %v240, %v240
      %v554 = vmul.f32 %v241, %v241
      %v555 = vmul.f32 %v242, %v242
      %v556 = vmul.f32 %v243, %v243
      %v557 = vmul.f32 %v244, %v244
      %v558 = vmul.f32 %v245, %v245
      %v559 = vmul.f32 %v246, %v246
      %v560 = vmul.f32 %v247, %v247
      %v561 = vmul.f32 %v248, %v248
      %v562 = vmul.f32 %v249, %v249
      %v563 = vmul.f32 %v250, %v250
      %v564 = vmul.f32 %v251, %v251
      %v565 = vmul.f32 %v252, %v252
      %v566 = vmul.f32 %v253, %v253
      %v567 = vmul.f32 %v254, %v254
      %v568 = vmul.f32 %v255, %v255
      %v569 = vmul.f32 %v256, %v256
      %v570 = vmul.f32 %v257, %v257
      %v571 = vmul.f32 %v258, %v258
      %v572 = vmul.f32 %v259, %v259
      %v573 = vmul.f32 %v260, %v260
      %v574 = vmul.f32 %v261, %v261
      %v575 = vmul.f32 %v262, %v262
      %v576 = vmul.f32 %v263, %v263
      %v577 = vmul.f32 %v264, %v264
      %v578 = vmul.f32 %v265, %v265
      %v579 = vmul.f32 %v266, %v266
      %v580 = vmul.f32 %v267, %v267
      %v581 = vmul.f32 %v268, %v268
      %v582 = vmul.f32 %v269, %v269
      %v583 = vmul.f32 %v270, %v270
      %v584 = vmul.f32 %v271, %v271
      %v585 = vmul.f32 %v272, %v272
      %v586 = vmul.f32 %v273, %v273
      %v587 = vmul.f32 %v274, %v274
      %v588 = vmul.f32 %v275, %v275
      %v589 = vmul.f32 %v276, %v276
      %v590 = vmul.f32 %v277, %v277
      %v591 = vmul.f32 %v278, %v278
      %v592 = vmul.f32 %v279, %v279
      %v593 = vmul.f32 %v280, %v280
      %v594 = vmul.f32 %v281, %v281
      %v595 = vmul.f32 %v282, %v282
      %v596 = vmul.f32 %v283, %v283
      %v597 = vmul.f32 %v284, %v284
      %v598 = vmul.f32 %v285, %v285
      %v599 = vmul.f32 %v286, %v286
      %v600 = vmul.f32 %v287, %v287
      %v601 = vmul.f32 %v288, %v288
      %v602 = vmul.f32 %v289, %v289
      %v603 = vmul.f32 %v290, %v290
      %v604 = vmul.f32 %v291, %v291
      %v605 = vmul.f32 %v292, %v292
      %v606 = vmul.f32 %v293, %v293
      %v607 = vmul.f32 %v294, %v294
      %v608 = vmul.f32 %v295, %v295
      %v609 = vsel %vm296, %v531, 0.0
      %610 = vadd.xlane.f32.xlu0 %v609
      %v611 = vpop.xlane.xlu0 %610
      %v612 = vsel %vm296, %v532, 0.0
      %613 = vadd.xlane.f32.xlu0 %v612
      %v614 = vpop.xlane.xlu0 %613
      %v615 = vsel %vm296, %v533, 0.0
      %616 = vadd.xlane.f32.xlu0 %v615
      %v617 = vpop.xlane.xlu0 %616
      %v618 = vsel %vm296, %v534, 0.0
      %619 = vadd.xlane.f32.xlu0 %v618
      %v620 = vpop.xlane.xlu0 %619
      %v621 = vsel %vm296, %v535, 0.0
      %622 = vadd.xlane.f32.xlu0 %v621
      %v623 = vpop.xlane.xlu0 %622
      %v624 = vsel %vm296, %v536, 0.0
      %625 = vadd.xlane.f32.xlu0 %v624
      %v626 = vpop.xlane.xlu0 %625
      %v627 = vsel %vm296, %v537, 0.0
      %628 = vadd.xlane.f32.xlu0 %v627
      %v629 = vpop.xlane.xlu0 %628
      %v630 = vsel %vm296, %v538, 0.0
      %631 = vadd.xlane.f32.xlu0 %v630
      %v632 = vpop.xlane.xlu0 %631
      %v633 = vsel %vm296, %v539, 0.0
      %634 = vadd.xlane.f32.xlu0 %v633
      %v635 = vpop.xlane.xlu0 %634
      %v636 = vsel %vm296, %v540, 0.0
      %637 = vadd.xlane.f32.xlu0 %v636
      %v638 = vpop.xlane.xlu0 %637
      %v639 = vsel %vm296, %v541, 0.0
      %640 = vadd.xlane.f32.xlu0 %v639
      %v641 = vpop.xlane.xlu0 %640
      %v642 = vsel %vm296, %v542, 0.0
      %643 = vadd.xlane.f32.xlu0 %v642
      %v644 = vpop.xlane.xlu0 %643
      %v645 = vsel %vm296, %v543, 0.0
      %646 = vadd.xlane.f32.xlu0 %v645
      %v647 = vpop.xlane.xlu0 %646
      %v648 = vsel %vm296, %v544, 0.0
      %649 = vadd.xlane.f32.xlu0 %v648
      %v650 = vpop.xlane.xlu0 %649
      %v651 = vsel %vm296, %v545, 0.0
      %652 = vadd.xlane.f32.xlu0 %v651
      %v653 = vpop.xlane.xlu0 %652
      %v654 = vsel %vm296, %v546, 0.0
      %655 = vadd.xlane.f32.xlu0 %v654
      %v656 = vpop.xlane.xlu0 %655
      %v657 = vsel %vm296, %v547, 0.0
      %658 = vadd.xlane.f32.xlu0 %v657
      %v659 = vpop.xlane.xlu0 %658
      %v660 = vsel %vm296, %v548, 0.0
      %661 = vadd.xlane.f32.xlu0 %v660
      %v662 = vpop.xlane.xlu0 %661
      %v663 = vsel %vm296, %v549, 0.0
      %664 = vadd.xlane.f32.xlu0 %v663
      %v665 = vpop.xlane.xlu0 %664
      %v666 = vsel %vm296, %v550, 0.0
      %667 = vadd.xlane.f32.xlu0 %v666
      %v668 = vpop.xlane.xlu0 %667
      %v669 = vsel %vm296, %v551, 0.0
      %670 = vadd.xlane.f32.xlu0 %v669
      %v671 = vpop.xlane.xlu0 %670
      %v672 = vsel %vm296, %v552, 0.0
      %673 = vadd.xlane.f32.xlu0 %v672
      %v674 = vpop.xlane.xlu0 %673
      %v675 = vsel %vm296, %v553, 0.0
      %676 = vadd.xlane.f32.xlu0 %v675
      %v677 = vpop.xlane.xlu0 %676
      %v678 = vsel %vm296, %v554, 0.0
      %679 = vadd.xlane.f32.xlu0 %v678
      %v680 = vpop.xlane.xlu0 %679
      %v681 = vsel %vm296, %v555, 0.0
      %682 = vadd.xlane.f32.xlu0 %v681
      %v683 = vpop.xlane.xlu0 %682
      %v684 = vsel %vm296, %v556, 0.0
      %685 = vadd.xlane.f32.xlu0 %v684
      %v686 = vpop.xlane.xlu0 %685
      %v687 = vsel %vm296, %v557, 0.0
      %688 = vadd.xlane.f32.xlu0 %v687
      %v689 = vpop.xlane.xlu0 %688
      %v690 = vsel %vm296, %v558, 0.0
      %691 = vadd.xlane.f32.xlu0 %v690
      %v692 = vpop.xlane.xlu0 %691
      %v693 = vsel %vm296, %v559, 0.0
      %694 = vadd.xlane.f32.xlu0 %v693
      %v695 = vpop.xlane.xlu0 %694
      %v696 = vsel %vm296, %v560, 0.0
      %697 = vadd.xlane.f32.xlu0 %v696
      %v698 = vpop.xlane.xlu0 %697
      %v699 = vsel %vm296, %v561, 0.0
      %700 = vadd.xlane.f32.xlu0 %v699
      %v701 = vpop.xlane.xlu0 %700
      %v702 = vsel %vm296, %v562, 0.0
      %703 = vadd.xlane.f32.xlu0 %v702
      %v704 = vpop.xlane.xlu0 %703
      %v705 = vsel %vm296, %v563, 0.0
      %706 = vadd.xlane.f32.xlu0 %v705
      %v707 = vpop.xlane.xlu0 %706
      %v708 = vsel %vm296, %v564, 0.0
      %709 = vadd.xlane.f32.xlu0 %v708
      %v710 = vpop.xlane.xlu0 %709
      %v711 = vsel %vm296, %v565, 0.0
      %712 = vadd.xlane.f32.xlu0 %v711
      %v713 = vpop.xlane.xlu0 %712
      %v714 = vsel %vm296, %v566, 0.0
      %715 = vadd.xlane.f32.xlu0 %v714
      %v716 = vpop.xlane.xlu0 %715
      %v717 = vsel %vm296, %v567, 0.0
      %718 = vadd.xlane.f32.xlu0 %v717
      %v719 = vpop.xlane.xlu0 %718
      %v720 = vsel %vm296, %v568, 0.0
      %721 = vadd.xlane.f32.xlu0 %v720
      %v722 = vpop.xlane.xlu0 %721
      %v723 = vsel %vm296, %v569, 0.0
      %724 = vadd.xlane.f32.xlu0 %v723
      %v725 = vpop.xlane.xlu0 %724
      %v726 = vsel %vm296, %v570, 0.0
      %727 = vadd.xlane.f32.xlu0 %v726
      %v728 = vpop.xlane.xlu0 %727
      %v729 = vsel %vm296, %v571, 0.0
      %730 = vadd.xlane.f32.xlu0 %v729
      %v731 = vpop.xlane.xlu0 %730
      %v732 = vsel %vm296, %v572, 0.0
      %733 = vadd.xlane.f32.xlu0 %v732
      %v734 = vpop.xlane.xlu0 %733
      %v735 = vsel %vm296, %v573, 0.0
      %736 = vadd.xlane.f32.xlu0 %v735
      %v737 = vpop.xlane.xlu0 %736
      %v738 = vsel %vm296, %v574, 0.0
      %739 = vadd.xlane.f32.xlu0 %v738
      %v740 = vpop.xlane.xlu0 %739
      %v741 = vsel %vm296, %v575, 0.0
      %742 = vadd.xlane.f32.xlu0 %v741
      %v743 = vpop.xlane.xlu0 %742
      %v744 = vsel %vm296, %v576, 0.0
      %745 = vadd.xlane.f32.xlu0 %v744
      %v746 = vpop.xlane.xlu0 %745
      %v747 = vsel %vm296, %v577, 0.0
      %748 = vadd.xlane.f32.xlu0 %v747
      %v749 = vpop.xlane.xlu0 %748
      %v750 = vsel %vm296, %v578, 0.0
      %751 = vadd.xlane.f32.xlu0 %v750
      %v752 = vpop.xlane.xlu0 %751
      %v753 = vsel %vm296, %v579, 0.0
      %754 = vadd.xlane.f32.xlu0 %v753
      %v755 = vpop.xlane.xlu0 %754
      %v756 = vsel %vm296, %v580, 0.0
      %757 = vadd.xlane.f32.xlu0 %v756
      %v758 = vpop.xlane.xlu0 %757
      %v759 = vsel %vm296, %v581, 0.0
      %760 = vadd.xlane.f32.xlu0 %v759
      %v761 = vpop.xlane.xlu0 %760
      %v762 = vsel %vm296, %v582, 0.0
      %763 = vadd.xlane.f32.xlu0 %v762
      %v764 = vpop.xlane.xlu0 %763
      %v765 = vsel %vm296, %v583, 0.0
      %766 = vadd.xlane.f32.xlu0 %v765
      %v767 = vpop.xlane.xlu0 %766
      %v768 = vsel %vm296, %v584, 0.0
      %769 = vadd.xlane.f32.xlu0 %v768
      %v770 = vpop.xlane.xlu0 %769
      %v771 = vsel %vm296, %v585, 0.0
      %772 = vadd.xlane.f32.xlu0 %v771
      %v773 = vpop.xlane.xlu0 %772
      %v774 = vsel %vm296, %v586, 0.0
      %775 = vadd.xlane.f32.xlu0 %v774
      %v776 = vpop.xlane.xlu0 %775
      %v777 = vsel %vm296, %v587, 0.0
      %778 = vadd.xlane.f32.xlu0 %v777
      %v779 = vpop.xlane.xlu0 %778
      %v780 = vsel %vm296, %v588, 0.0
      %781 = vadd.xlane.f32.xlu0 %v780
      %v782 = vpop.xlane.xlu0 %781
      %v783 = vsel %vm296, %v589, 0.0
      %784 = vadd.xlane.f32.xlu0 %v783
      %v785 = vpop.xlane.xlu0 %784
      %v786 = vsel %vm296, %v590, 0.0
      %787 = vadd.xlane.f32.xlu0 %v786
      %v788 = vpop.xlane.xlu0 %787
      %v789 = vsel %vm296, %v591, 0.0
      %790 = vadd.xlane.f32.xlu0 %v789
      %v791 = vpop.xlane.xlu0 %790
      %v792 = vsel %vm296, %v592, 0.0
      %793 = vadd.xlane.f32.xlu0 %v792
      %v794 = vpop.xlane.xlu0 %793
      %v795 = vsel %vm296, %v593, 0.0
      %796 = vadd.xlane.f32.xlu0 %v795
      %v797 = vpop.xlane.xlu0 %796
      %v798 = vsel %vm296, %v594, 0.0
      %799 = vadd.xlane.f32.xlu0 %v798
      %v800 = vpop.xlane.xlu0 %799
      %v801 = vsel %vm296, %v595, 0.0
      %802 = vadd.xlane.f32.xlu0 %v801
      %v803 = vpop.xlane.xlu0 %802
      %v804 = vsel %vm296, %v596, 0.0
      %805 = vadd.xlane.f32.xlu0 %v804
      %v806 = vpop.xlane.xlu0 %805
      %v807 = vsel %vm296, %v597, 0.0
      %808 = vadd.xlane.f32.xlu0 %v807
      %v809 = vpop.xlane.xlu0 %808
      %v810 = vsel %vm296, %v598, 0.0
      %811 = vadd.xlane.f32.xlu0 %v810
      %v812 = vpop.xlane.xlu0 %811
      %v813 = vsel %vm296, %v599, 0.0
      %814 = vadd.xlane.f32.xlu0 %v813
      %v815 = vpop.xlane.xlu0 %814
      %v816 = vsel %vm296, %v600, 0.0
      %817 = vadd.xlane.f32.xlu0 %v816
      %v818 = vpop.xlane.xlu0 %817
      %v819 = vsel %vm296, %v601, 0.0
      %820 = vadd.xlane.f32.xlu0 %v819
      %v821 = vpop.xlane.xlu0 %820
      %v822 = vsel %vm296, %v602, 0.0
      %823 = vadd.xlane.f32.xlu0 %v822
      %v824 = vpop.xlane.xlu0 %823
      %v825 = vsel %vm296, %v603, 0.0
      %826 = vadd.xlane.f32.xlu0 %v825
      %v827 = vpop.xlane.xlu0 %826
      %v828 = vsel %vm296, %v604, 0.0
      %829 = vadd.xlane.f32.xlu0 %v828
      %v830 = vpop.xlane.xlu0 %829
      %v831 = vsel %vm296, %v605, 0.0
      %832 = vadd.xlane.f32.xlu0 %v831
      %v833 = vpop.xlane.xlu0 %832
      %v834 = vsel %vm296, %v606, 0.0
      %835 = vadd.xlane.f32.xlu0 %v834
      %v836 = vpop.xlane.xlu0 %835
      %v837 = vsel %vm296, %v607, 0.0
      %838 = vadd.xlane.f32.xlu0 %v837
      %v839 = vpop.xlane.xlu0 %838
      %v840 = vsel %vm296, %v608, 0.0
      %841 = vadd.xlane.f32.xlu0 %v840
      %v842 = vpop.xlane.xlu0 %841
      %v843 = vmul.f32 %v299, 0.020408163
      %v844 = vmul.f32 %v302, 0.020408163
      %v845 = vmul.f32 %v305, 0.020408163
      %v846 = vmul.f32 %v308, 0.020408163
      %v847 = vmul.f32 %v311, 0.020408163
      %v848 = vmul.f32 %v314, 0.020408163
      %v849 = vmul.f32 %v317, 0.020408163
      %v850 = vmul.f32 %v320, 0.020408163
      %v851 = vmul.f32 %v323, 0.020408163
      %v852 = vmul.f32 %v326, 0.020408163
      %v853 = vmul.f32 %v329, 0.020408163
      %v854 = vmul.f32 %v332, 0.020408163
      %v855 = vmul.f32 %v335, 0.020408163
      %v856 = vmul.f32 %v338, 0.020408163
      %v857 = vmul.f32 %v341, 0.020408163
      %v858 = vmul.f32 %v344, 0.020408163
      %v859 = vmul.f32 %v347, 0.020408163
      %v860 = vmul.f32 %v350, 0.020408163
      %v861 = vmul.f32 %v353, 0.020408163
      %v862 = vmul.f32 %v356, 0.020408163
      %v863 = vmul.f32 %v359, 0.020408163
      %v864 = vmul.f32 %v362, 0.020408163
      %v865 = vmul.f32 %v365, 0.020408163
      %v866 = vmul.f32 %v368, 0.020408163
      %v867 = vmul.f32 %v371, 0.020408163
      %v868 = vmul.f32 %v374, 0.020408163
      %v869 = vmul.f32 %v377, 0.020408163
      %v870 = vmul.f32 %v380, 0.020408163
      %v871 = vmul.f32 %v383, 0.020408163
      %v872 = vmul.f32 %v386, 0.020408163
      %v873 = vmul.f32 %v389, 0.020408163
      %v874 = vmul.f32 %v392, 0.020408163
      %v875 = vmul.f32 %v395, 0.020408163
      %v876 = vmul.f32 %v398, 0.020408163
      %v877 = vmul.f32 %v401, 0.020408163
      %v878 = vmul.f32 %v404, 0.020408163
      %v879 = vmul.f32 %v407, 0.020408163
      %v880 = vmul.f32 %v410, 0.020408163
      %v881 = vmul.f32 %v413, 0.020408163
      %v882 = vmul.f32 %v416, 0.020408163
      %v883 = vmul.f32 %v419, 0.020408163
      %v884 = vmul.f32 %v422, 0.020408163
      %v885 = vmul.f32 %v425, 0.020408163
      %v886 = vmul.f32 %v428, 0.020408163
      %v887 = vmul.f32 %v431, 0.020408163
      %v888 = vmul.f32 %v434, 0.020408163
      %v889 = vmul.f32 %v437, 0.020408163
      %v890 = vmul.f32 %v440, 0.020408163
      %v891 = vmul.f32 %v443, 0.020408163
      %v892 = vmul.f32 %v446, 0.020408163
      %v893 = vmul.f32 %v449, 0.020408163
      %v894 = vmul.f32 %v452, 0.020408163
      %v895 = vmul.f32 %v455, 0.020408163
      %v896 = vmul.f32 %v458, 0.020408163
      %v897 = vmul.f32 %v461, 0.020408163
      %v898 = vmul.f32 %v464, 0.020408163
      %v899 = vmul.f32 %v467, 0.020408163
      %v900 = vmul.f32 %v470, 0.020408163
      %v901 = vmul.f32 %v473, 0.020408163
      %v902 = vmul.f32 %v476, 0.020408163
      %v903 = vmul.f32 %v479, 0.020408163
      %v904 = vmul.f32 %v482, 0.020408163
      %v905 = vmul.f32 %v485, 0.020408163
      %v906 = vmul.f32 %v488, 0.020408163
      %v907 = vmul.f32 %v491, 0.020408163
      %v908 = vmul.f32 %v494, 0.020408163
      %v909 = vmul.f32 %v497, 0.020408163
      %v910 = vmul.f32 %v500, 0.020408163
      %v911 = vmul.f32 %v503, 0.020408163
      %v912 = vmul.f32 %v506, 0.020408163
      %v913 = vmul.f32 %v509, 0.020408163
      %v914 = vmul.f32 %v512, 0.020408163
      %v915 = vmul.f32 %v515, 0.020408163
      %v916 = vmul.f32 %v518, 0.020408163
      %v917 = vmul.f32 %v521, 0.020408163
      %v918 = vmul.f32 %v524, 0.020408163
      %v919 = vmul.f32 %v527, 0.020408163
      %v920 = vmul.f32 %v530, 0.020408163
      %v921 = vmul.f32 %v611, 0.020408163
      %v922 = vmul.f32 %v614, 0.020408163
      %v923 = vmul.f32 %v617, 0.020408163
      %v924 = vmul.f32 %v620, 0.020408163
      %v925 = vmul.f32 %v623, 0.020408163
      %v926 = vmul.f32 %v626, 0.020408163
      %v927 = vmul.f32 %v629, 0.020408163
      %v928 = vmul.f32 %v632, 0.020408163
      %v929 = vmul.f32 %v635, 0.020408163
      %v930 = vmul.f32 %v638, 0.020408163
      %v931 = vmul.f32 %v641, 0.020408163
      %v932 = vmul.f32 %v644, 0.020408163
      %v933 = vmul.f32 %v647, 0.020408163
      %v934 = vmul.f32 %v650, 0.020408163
      %v935 = vmul.f32 %v653, 0.020408163
      %v936 = vmul.f32 %v656, 0.020408163
      %v937 = vmul.f32 %v659, 0.020408163
      %v938 = vmul.f32 %v662, 0.020408163
      %v939 = vmul.f32 %v665, 0.020408163
      %v940 = vmul.f32 %v668, 0.020408163
      %v941 = vmul.f32 %v671, 0.020408163
      %v942 = vmul.f32 %v674, 0.020408163
      %v943 = vmul.f32 %v677, 0.020408163
      %v944 = vmul.f32 %v680, 0.020408163
      %v945 = vmul.f32 %v683, 0.020408163
      %v946 = vmul.f32 %v686, 0.020408163
      %v947 = vmul.f32 %v689, 0.020408163
      %v948 = vmul.f32 %v692, 0.020408163
      %v949 = vmul.f32 %v695, 0.020408163
      %v950 = vmul.f32 %v698, 0.020408163
      %v951 = vmul.f32 %v701, 0.020408163
      %v952 = vmul.f32 %v704, 0.020408163
      %v953 = vmul.f32 %v707, 0.020408163
      %v954 = vmul.f32 %v710, 0.020408163
      %v955 = vmul.f32 %v713, 0.020408163
      %v956 = vmul.f32 %v716, 0.020408163
      %v957 = vmul.f32 %v719, 0.020408163
      %v958 = vmul.f32 %v722, 0.020408163
      %v959 = vmul.f32 %v725, 0.020408163
      %v960 = vmul.f32 %v728, 0.020408163
      %v961 = vmul.f32 %v731, 0.020408163
      %v962 = vmul.f32 %v734, 0.020408163
      %v963 = vmul.f32 %v737, 0.020408163
      %v964 = vmul.f32 %v740, 0.020408163
      %v965 = vmul.f32 %v743, 0.020408163
      %v966 = vmul.f32 %v746, 0.020408163
      %v967 = vmul.f32 %v749, 0.020408163
      %v968 = vmul.f32 %v752, 0.020408163
      %v969 = vmul.f32 %v755, 0.020408163
      %v970 = vmul.f32 %v758, 0.020408163
      %v971 = vmul.f32 %v761, 0.020408163
      %v972 = vmul.f32 %v764, 0.020408163
      %v973 = vmul.f32 %v767, 0.020408163
      %v974 = vmul.f32 %v770, 0.020408163
      %v975 = vmul.f32 %v773, 0.020408163
      %v976 = vmul.f32 %v776, 0.020408163
      %v977 = vmul.f32 %v779, 0.020408163
      %v978 = vmul.f32 %v782, 0.020408163
      %v979 = vmul.f32 %v785, 0.020408163
      %v980 = vmul.f32 %v788, 0.020408163
      %v981 = vmul.f32 %v791, 0.020408163
      %v982 = vmul.f32 %v794, 0.020408163
      %v983 = vmul.f32 %v797, 0.020408163
      %v984 = vmul.f32 %v800, 0.020408163
      %v985 = vmul.f32 %v803, 0.020408163
      %v986 = vmul.f32 %v806, 0.020408163
      %v987 = vmul.f32 %v809, 0.020408163
      %v988 = vmul.f32 %v812, 0.020408163
      %v989 = vmul.f32 %v815, 0.020408163
      %v990 = vmul.f32 %v818, 0.020408163
      %v991 = vmul.f32 %v821, 0.020408163
      %v992 = vmul.f32 %v824, 0.020408163
      %v993 = vmul.f32 %v827, 0.020408163
      %v994 = vmul.f32 %v830, 0.020408163
      %v995 = vmul.f32 %v833, 0.020408163
      %v996 = vmul.f32 %v836, 0.020408163
      %v997 = vmul.f32 %v839, 0.020408163
      %v998 = vmul.f32 %v842, 0.020408163
      %v999 = vmul.f32 %v843, %v843
      %v1000 = vmul.f32 %v844, %v844
      %v1001 = vmul.f32 %v845, %v845
      %v1002 = vmul.f32 %v846, %v846
      %v1003 = vmul.f32 %v847, %v847
      %v1004 = vmul.f32 %v848, %v848
      %v1005 = vmul.f32 %v849, %v849
      %v1006 = vmul.f32 %v850, %v850
      %v1007 = vmul.f32 %v851, %v851
      %v1008 = vmul.f32 %v852, %v852
      %v1009 = vmul.f32 %v853, %v853
      %v1010 = vmul.f32 %v854, %v854
      %v1011 = vmul.f32 %v855, %v855
      %v1012 = vmul.f32 %v856, %v856
      %v1013 = vmul.f32 %v857, %v857
      %v1014 = vmul.f32 %v858, %v858
      %v1015 = vmul.f32 %v859, %v859
      %v1016 = vmul.f32 %v860, %v860
      %v1017 = vmul.f32 %v861, %v861
      %v1018 = vmul.f32 %v862, %v862
      %v1019 = vmul.f32 %v863, %v863
      %v1020 = vmul.f32 %v864, %v864
      %v1021 = vmul.f32 %v865, %v865
      %v1022 = vmul.f32 %v866, %v866
      %v1023 = vmul.f32 %v867, %v867
      %v1024 = vmul.f32 %v868, %v868
      %v1025 = vmul.f32 %v869, %v869
      %v1026 = vmul.f32 %v870, %v870
      %v1027 = vmul.f32 %v871, %v871
      %v1028 = vmul.f32 %v872, %v872
      %v1029 = vmul.f32 %v873, %v873
      %v1030 = vmul.f32 %v874, %v874
      %v1031 = vmul.f32 %v875, %v875
      %v1032 = vmul.f32 %v876, %v876
      %v1033 = vmul.f32 %v877, %v877
      %v1034 = vmul.f32 %v878, %v878
      %v1035 = vmul.f32 %v879, %v879
      %v1036 = vmul.f32 %v880, %v880
      %v1037 = vmul.f32 %v881, %v881
      %v1038 = vmul.f32 %v882, %v882
      %v1039 = vmul.f32 %v883, %v883
      %v1040 = vmul.f32 %v884, %v884
      %v1041 = vmul.f32 %v885, %v885
      %v1042 = vmul.f32 %v886, %v886
      %v1043 = vmul.f32 %v887, %v887
      %v1044 = vmul.f32 %v888, %v888
      %v1045 = vmul.f32 %v889, %v889
      %v1046 = vmul.f32 %v890, %v890
      %v1047 = vmul.f32 %v891, %v891
      %v1048 = vmul.f32 %v892, %v892
      %v1049 = vmul.f32 %v893, %v893
      %v1050 = vmul.f32 %v894, %v894
      %v1051 = vmul.f32 %v895, %v895
      %v1052 = vmul.f32 %v896, %v896
      %v1053 = vmul.f32 %v897, %v897
      %v1054 = vmul.f32 %v898, %v898
      %v1055 = vmul.f32 %v899, %v899
      %v1056 = vmul.f32 %v900, %v900
      %v1057 = vmul.f32 %v901, %v901
      %v1058 = vmul.f32 %v902, %v902
      %v1059 = vmul.f32 %v903, %v903
      %v1060 = vmul.f32 %v904, %v904
      %v1061 = vmul.f32 %v905, %v905
      %v1062 = vmul.f32 %v906, %v906
      %v1063 = vmul.f32 %v907, %v907
      %v1064 = vmul.f32 %v908, %v908
      %v1065 = vmul.f32 %v909, %v909
      %v1066 = vmul.f32 %v910, %v910
      %v1067 = vmul.f32 %v911, %v911
      %v1068 = vmul.f32 %v912, %v912
      %v1069 = vmul.f32 %v913, %v913
      %v1070 = vmul.f32 %v914, %v914
      %v1071 = vmul.f32 %v915, %v915
      %v1072 = vmul.f32 %v916, %v916
      %v1073 = vmul.f32 %v917, %v917
      %v1074 = vmul.f32 %v918, %v918
      %v1075 = vmul.f32 %v919, %v919
      %v1076 = vmul.f32 %v920, %v920
      %v1077 = vsub.f32 %v921, %v999
      %v1078 = vsub.f32 %v922, %v1000
      %v1079 = vsub.f32 %v923, %v1001
      %v1080 = vsub.f32 %v924, %v1002
      %v1081 = vsub.f32 %v925, %v1003
      %v1082 = vsub.f32 %v926, %v1004
      %v1083 = vsub.f32 %v927, %v1005
      %v1084 = vsub.f32 %v928, %v1006
      %v1085 = vsub.f32 %v929, %v1007
      %v1086 = vsub.f32 %v930, %v1008
      %v1087 = vsub.f32 %v931, %v1009
      %v1088 = vsub.f32 %v932, %v1010
      %v1089 = vsub.f32 %v933, %v1011
      %v1090 = vsub.f32 %v934, %v1012
      %v1091 = vsub.f32 %v935, %v1013
      %v1092 = vsub.f32 %v936, %v1014
      %v1093 = vsub.f32 %v937, %v1015
      %v1094 = vsub.f32 %v938, %v1016
      %v1095 = vsub.f32 %v939, %v1017
      %v1096 = vsub.f32 %v940, %v1018
      %v1097 = vsub.f32 %v941, %v1019
      %v1098 = vsub.f32 %v942, %v1020
      %v1099 = vsub.f32 %v943, %v1021
      %v1100 = vsub.f32 %v944, %v1022
      %v1101 = vsub.f32 %v945, %v1023
      %v1102 = vsub.f32 %v946, %v1024
      %v1103 = vsub.f32 %v947, %v1025
      %v1104 = vsub.f32 %v948, %v1026
      %v1105 = vsub.f32 %v949, %v1027
      %v1106 = vsub.f32 %v950, %v1028
      %v1107 = vsub.f32 %v951, %v1029
      %v1108 = vsub.f32 %v952, %v1030
      %v1109 = vsub.f32 %v953, %v1031
      %v1110 = vsub.f32 %v954, %v1032
      %v1111 = vsub.f32 %v955, %v1033
      %v1112 = vsub.f32 %v956, %v1034
      %v1113 = vsub.f32 %v957, %v1035
      %v1114 = vsub.f32 %v958, %v1036
      %v1115 = vsub.f32 %v959, %v1037
      %v1116 = vsub.f32 %v960, %v1038
      %v1117 = vsub.f32 %v961, %v1039
      %v1118 = vsub.f32 %v962, %v1040
      %v1119 = vsub.f32 %v963, %v1041
      %v1120 = vsub.f32 %v964, %v1042
      %v1121 = vsub.f32 %v965, %v1043
      %v1122 = vsub.f32 %v966, %v1044
      %v1123 = vsub.f32 %v967, %v1045
      %v1124 = vsub.f32 %v968, %v1046
      %v1125 = vsub.f32 %v969, %v1047
      %v1126 = vsub.f32 %v970, %v1048
      %v1127 = vsub.f32 %v971, %v1049
      %v1128 = vsub.f32 %v972, %v1050
      %v1129 = vsub.f32 %v973, %v1051
      %v1130 = vsub.f32 %v974, %v1052
      %v1131 = vsub.f32 %v975, %v1053
      %v1132 = vsub.f32 %v976, %v1054
      %v1133 = vsub.f32 %v977, %v1055
      %v1134 = vsub.f32 %v978, %v1056
      %v1135 = vsub.f32 %v979, %v1057
      %v1136 = vsub.f32 %v980, %v1058
      %v1137 = vsub.f32 %v981, %v1059
      %v1138 = vsub.f32 %v982, %v1060
      %v1139 = vsub.f32 %v983, %v1061
      %v1140 = vsub.f32 %v984, %v1062
      %v1141 = vsub.f32 %v985, %v1063
      %v1142 = vsub.f32 %v986, %v1064
      %v1143 = vsub.f32 %v987, %v1065
      %v1144 = vsub.f32 %v988, %v1066
      %v1145 = vsub.f32 %v989, %v1067
      %v1146 = vsub.f32 %v990, %v1068
      %v1147 = vsub.f32 %v991, %v1069
      %v1148 = vsub.f32 %v992, %v1070
      %v1149 = vsub.f32 %v993, %v1071
      %v1150 = vsub.f32 %v994, %v1072
      %v1151 = vsub.f32 %v995, %v1073
      %v1152 = vsub.f32 %v996, %v1074
      %v1153 = vsub.f32 %v997, %v1075
      %v1154 = vsub.f32 %v998, %v1076
      %v1155 = vadd.f32 %v1077, 1e-05
      %v1156 = vadd.f32 %v1078, 1e-05
      %v1157 = vadd.f32 %v1079, 1e-05
      %v1158 = vadd.f32 %v1080, 1e-05
      %v1159 = vadd.f32 %v1081, 1e-05
      %v1160 = vadd.f32 %v1082, 1e-05
      %v1161 = vadd.f32 %v1083, 1e-05
      %v1162 = vadd.f32 %v1084, 1e-05
      %v1163 = vadd.f32 %v1085, 1e-05
      %v1164 = vadd.f32 %v1086, 1e-05
      %v1165 = vadd.f32 %v1087, 1e-05
      %v1166 = vadd.f32 %v1088, 1e-05
      %v1167 = vadd.f32 %v1089, 1e-05
      %v1168 = vadd.f32 %v1090, 1e-05
      %v1169 = vadd.f32 %v1091, 1e-05
      %v1170 = vadd.f32 %v1092, 1e-05
      %v1171 = vadd.f32 %v1093, 1e-05
      %v1172 = vadd.f32 %v1094, 1e-05
      %v1173 = vadd.f32 %v1095, 1e-05
      %v1174 = vadd.f32 %v1096, 1e-05
      %v1175 = vadd.f32 %v1097, 1e-05
      %v1176 = vadd.f32 %v1098, 1e-05
      %v1177 = vadd.f32 %v1099, 1e-05
      %v1178 = vadd.f32 %v1100, 1e-05
      %v1179 = vadd.f32 %v1101, 1e-05
      %v1180 = vadd.f32 %v1102, 1e-05
      %v1181 = vadd.f32 %v1103, 1e-05
      %v1182 = vadd.f32 %v1104, 1e-05
      %v1183 = vadd.f32 %v1105, 1e-05
      %v1184 = vadd.f32 %v1106, 1e-05
      %v1185 = vadd.f32 %v1107, 1e-05
      %v1186 = vadd.f32 %v1108, 1e-05
      %v1187 = vadd.f32 %v1109, 1e-05
      %v1188 = vadd.f32 %v1110, 1e-05
      %v1189 = vadd.f32 %v1111, 1e-05
      %v1190 = vadd.f32 %v1112, 1e-05
      %v1191 = vadd.f32 %v1113, 1e-05
      %v1192 = vadd.f32 %v1114, 1e-05
      %v1193 = vadd.f32 %v1115, 1e-05
      %v1194 = vadd.f32 %v1116, 1e-05
      %v1195 = vadd.f32 %v1117, 1e-05
      %v1196 = vadd.f32 %v1118, 1e-05
      %v1197 = vadd.f32 %v1119, 1e-05
      %v1198 = vadd.f32 %v1120, 1e-05
      %v1199 = vadd.f32 %v1121, 1e-05
      %v1200 = vadd.f32 %v1122, 1e-05
      %v1201 = vadd.f32 %v1123, 1e-05
      %v1202 = vadd.f32 %v1124, 1e-05
      %v1203 = vadd.f32 %v1125, 1e-05
      %v1204 = vadd.f32 %v1126, 1e-05
      %v1205 = vadd.f32 %v1127, 1e-05
      %v1206 = vadd.f32 %v1128, 1e-05
      %v1207 = vadd.f32 %v1129, 1e-05
      %v1208 = vadd.f32 %v1130, 1e-05
      %v1209 = vadd.f32 %v1131, 1e-05
      %v1210 = vadd.f32 %v1132, 1e-05
      %v1211 = vadd.f32 %v1133, 1e-05
      %v1212 = vadd.f32 %v1134, 1e-05
      %v1213 = vadd.f32 %v1135, 1e-05
      %v1214 = vadd.f32 %v1136, 1e-05
      %v1215 = vadd.f32 %v1137, 1e-05
      %v1216 = vadd.f32 %v1138, 1e-05
      %v1217 = vadd.f32 %v1139, 1e-05
      %v1218 = vadd.f32 %v1140, 1e-05
      %v1219 = vadd.f32 %v1141, 1e-05
      %v1220 = vadd.f32 %v1142, 1e-05
      %v1221 = vadd.f32 %v1143, 1e-05
      %v1222 = vadd.f32 %v1144, 1e-05
      %v1223 = vadd.f32 %v1145, 1e-05
      %v1224 = vadd.f32 %v1146, 1e-05
      %v1225 = vadd.f32 %v1147, 1e-05
      %v1226 = vadd.f32 %v1148, 1e-05
      %v1227 = vadd.f32 %v1149, 1e-05
      %v1228 = vadd.f32 %v1150, 1e-05
      %v1229 = vadd.f32 %v1151, 1e-05
      %v1230 = vadd.f32 %v1152, 1e-05
      %v1231 = vadd.f32 %v1153, 1e-05
      %v1232 = vadd.f32 %v1154, 1e-05
      %v1233 = vrsqrt.pop %v1155
      %v1234 = vrsqrt.pop %v1156
      %v1235 = vrsqrt.pop %v1157
      %v1236 = vrsqrt.pop %v1158
      %v1237 = vrsqrt.pop %v1159
      %v1238 = vrsqrt.pop %v1160
      %v1239 = vrsqrt.pop %v1161
      %v1240 = vrsqrt.pop %v1162
      %v1241 = vrsqrt.pop %v1163
      %v1242 = vrsqrt.pop %v1164
      %v1243 = vrsqrt.pop %v1165
      %v1244 = vrsqrt.pop %v1166
      %v1245 = vrsqrt.pop %v1167
      %v1246 = vrsqrt.pop %v1168
      %v1247 = vrsqrt.pop %v1169
      %v1248 = vrsqrt.pop %v1170
      %v1249 = vrsqrt.pop %v1171
      %v1250 = vrsqrt.pop %v1172
      %v1251 = vrsqrt.pop %v1173
      %v1252 = vrsqrt.pop %v1174
      %v1253 = vrsqrt.pop %v1175
      %v1254 = vrsqrt.pop %v1176
      %v1255 = vrsqrt.pop %v1177
      %v1256 = vrsqrt.pop %v1178
      %v1257 = vrsqrt.pop %v1179
      %v1258 = vrsqrt.pop %v1180
      %v1259 = vrsqrt.pop %v1181
      %v1260 = vrsqrt.pop %v1182
      %v1261 = vrsqrt.pop %v1183
      %v1262 = vrsqrt.pop %v1184
      %v1263 = vrsqrt.pop %v1185
      %v1264 = vrsqrt.pop %v1186
      %v1265 = vrsqrt.pop %v1187
      %v1266 = vrsqrt.pop %v1188
      %v1267 = vrsqrt.pop %v1189
      %v1268 = vrsqrt.pop %v1190
      %v1269 = vrsqrt.pop %v1191
      %v1270 = vrsqrt.pop %v1192
      %v1271 = vrsqrt.pop %v1193
      %v1272 = vrsqrt.pop %v1194
      %v1273 = vrsqrt.pop %v1195
      %v1274 = vrsqrt.pop %v1196
      %v1275 = vrsqrt.pop %v1197
      %v1276 = vrsqrt.pop %v1198
      %v1277 = vrsqrt.pop %v1199
      %v1278 = vrsqrt.pop %v1200
      %v1279 = vrsqrt.pop %v1201
      %v1280 = vrsqrt.pop %v1202
      %v1281 = vrsqrt.pop %v1203
      %v1282 = vrsqrt.pop %v1204
      %v1283 = vrsqrt.pop %v1205
      %v1284 = vrsqrt.pop %v1206
      %v1285 = vrsqrt.pop %v1207
      %v1286 = vrsqrt.pop %v1208
      %v1287 = vrsqrt.pop %v1209
      %v1288 = vrsqrt.pop %v1210
      %v1289 = vrsqrt.pop %v1211
      %v1290 = vrsqrt.pop %v1212
      %v1291 = vrsqrt.pop %v1213
      %v1292 = vrsqrt.pop %v1214
      %v1293 = vrsqrt.pop %v1215
      %v1294 = vrsqrt.pop %v1216
      %v1295 = vrsqrt.pop %v1217
      %v1296 = vrsqrt.pop %v1218
      %v1297 = vrsqrt.pop %v1219
      %v1298 = vrsqrt.pop %v1220
      %v1299 = vrsqrt.pop %v1221
      %v1300 = vrsqrt.pop %v1222
      %v1301 = vrsqrt.pop %v1223
      %v1302 = vrsqrt.pop %v1224
      %v1303 = vrsqrt.pop %v1225
      %v1304 = vrsqrt.pop %v1226
      %v1305 = vrsqrt.pop %v1227
      %v1306 = vrsqrt.pop %v1228
      %v1307 = vrsqrt.pop %v1229
      %v1308 = vrsqrt.pop %v1230
      %v1309 = vrsqrt.pop %v1231
      %v1310 = vrsqrt.pop %v1232
      %v1311 = vld [vmem:[%s204] sm:$0xff]
      %v1312 = vld [vmem:[%s204 + $0x8] sm:$0xff]
      %v1313 = vld [vmem:[%s204 + $0x10] sm:$0xff]
      %v1314 = vld [vmem:[%s204 + $0x18] sm:$0xff]
      %v1315 = vld [vmem:[%s204 + $0x20] sm:$0xff]
      %v1316 = vld [vmem:[%s204 + $0x28] sm:$0xff]
      %v1317 = vld [vmem:[%s204 + $0x30] sm:$0xff]
      %v1318 = vld [vmem:[%s204 + $0x38] sm:$0xff]
      %v1319 = vld [vmem:[%s204 + $0x40] sm:$0xff]
      %v1320 = vld [vmem:[%s204 + $0x48] sm:$0xff]
      %v1321 = vld [vmem:[%s204 + $0x50] sm:$0xff]
      %v1322 = vld [vmem:[%s204 + $0x58] sm:$0xff]
      %v1323 = vld [vmem:[%s204 + $0x60] sm:$0xff]
      %v1324 = vld [vmem:[%s204 + $0x68] sm:$0xff]
      %v1325 = vld [vmem:[%s204 + $0x70] sm:$0xff]
      %v1326 = vld [vmem:[%s204 + $0x78] sm:$0xff]
      %v1327 = vld [vmem:[%s204 + $0x80] sm:$0xff]
      %v1328 = vld [vmem:[%s204 + $0x88] sm:$0xff]
      %v1329 = vld [vmem:[%s204 + $0x90] sm:$0xff]
      %v1330 = vld [vmem:[%s204 + $0x98] sm:$0xff]
      %v1331 = vld [vmem:[%s204 + $0xa0] sm:$0xff]
      %v1332 = vld [vmem:[%s204 + $0xa8] sm:$0xff]
      %v1333 = vld [vmem:[%s204 + $0xb0] sm:$0xff]
      %v1334 = vld [vmem:[%s204 + $0xb8] sm:$0xff]
      %v1335 = vld [vmem:[%s204 + $0xc0] sm:$0xff]
      %v1336 = vld [vmem:[%s204 + $0xc8] sm:$0xff]
      %v1337 = vld [vmem:[%s204 + $0xd0] sm:$0xff]
      %v1338 = vld [vmem:[%s204 + $0xd8] sm:$0xff]
      %v1339 = vld [vmem:[%s204 + $0xe0] sm:$0xff]
      %v1340 = vld [vmem:[%s204 + $0xe8] sm:$0xff]
      %v1341 = vld [vmem:[%s204 + $0xf0] sm:$0xff]
      %v1342 = vld [vmem:[%s204 + $0xf8] sm:$0xff]
      %v1343 = vld [vmem:[%s204 + $0x100] sm:$0xff]
      %v1344 = vld [vmem:[%s204 + $0x108] sm:$0xff]
      %v1345 = vld [vmem:[%s204 + $0x110] sm:$0xff]
      %v1346 = vld [vmem:[%s204 + $0x118] sm:$0xff]
      %v1347 = vld [vmem:[%s204 + $0x120] sm:$0xff]
      %v1348 = vld [vmem:[%s204 + $0x128] sm:$0xff]
      %v1349 = vld [vmem:[%s204 + $0x130] sm:$0xff]
      %v1350 = vld [vmem:[%s204 + $0x138] sm:$0xff]
      %v1351 = vld [vmem:[%s204 + $0x140] sm:$0xff]
      %v1352 = vld [vmem:[%s204 + $0x148] sm:$0xff]
      %v1353 = vld [vmem:[%s204 + $0x150] sm:$0xff]
      %v1354 = vld [vmem:[%s204 + $0x158] sm:$0xff]
      %v1355 = vld [vmem:[%s204 + $0x160] sm:$0xff]
      %v1356 = vld [vmem:[%s204 + $0x168] sm:$0xff]
      %v1357 = vld [vmem:[%s204 + $0x170] sm:$0xff]
      %v1358 = vld [vmem:[%s204 + $0x178] sm:$0xff]
      %v1359 = vld [vmem:[%s204 + $0x180] sm:$0xff]
      %v1360 = vld [vmem:[%s204 + $0x188] sm:$0xff]
      %v1361 = vld [vmem:[%s204 + $0x190] sm:$0xff]
      %v1362 = vld [vmem:[%s204 + $0x198] sm:$0xff]
      %v1363 = vld [vmem:[%s204 + $0x1a0] sm:$0xff]
      %v1364 = vld [vmem:[%s204 + $0x1a8] sm:$0xff]
      %v1365 = vld [vmem:[%s204 + $0x1b0] sm:$0xff]
      %v1366 = vld [vmem:[%s204 + $0x1b8] sm:$0xff]
      %v1367 = vld [vmem:[%s204 + $0x1c0] sm:$0xff]
      %v1368 = vld [vmem:[%s204 + $0x1c8] sm:$0xff]
      %v1369 = vld [vmem:[%s204 + $0x1d0] sm:$0xff]
      %v1370 = vld [vmem:[%s204 + $0x1d8] sm:$0xff]
      %v1371 = vld [vmem:[%s204 + $0x1e0] sm:$0xff]
      %v1372 = vld [vmem:[%s204 + $0x1e8] sm:$0xff]
      %v1373 = vld [vmem:[%s204 + $0x1f0] sm:$0xff]
      %v1374 = vld [vmem:[%s204 + $0x1f8] sm:$0xff]
      %v1375 = vld [vmem:[%s204 + $0x200] sm:$0xff]
      %v1376 = vld [vmem:[%s204 + $0x208] sm:$0xff]
      %v1377 = vld [vmem:[%s204 + $0x210] sm:$0xff]
      %v1378 = vld [vmem:[%s204 + $0x218] sm:$0xff]
      %v1379 = vld [vmem:[%s204 + $0x220] sm:$0xff]
      %v1380 = vld [vmem:[%s204 + $0x228] sm:$0xff]
      %v1381 = vld [vmem:[%s204 + $0x230] sm:$0xff]
      %v1382 = vld [vmem:[%s204 + $0x238] sm:$0xff]
      %v1383 = vld [vmem:[%s204 + $0x240] sm:$0xff]
      %v1384 = vld [vmem:[%s204 + $0x248] sm:$0xff]
      %v1385 = vld [vmem:[%s204 + $0x250] sm:$0xff]
      %v1386 = vld [vmem:[%s204 + $0x258] sm:$0xff]
      %v1387 = vld [vmem:[%s204 + $0x260] sm:$0xff]
      %v1388 = vld [vmem:[%s204 + $0x268] sm:$0xff]
      %v1389 = vmul.f32 %v1311, %v1233
      %v1390 = vmul.f32 %v1312, %v1234
      %v1391 = vmul.f32 %v1313, %v1235
      %v1392 = vmul.f32 %v1314, %v1236
      %v1393 = vmul.f32 %v1315, %v1237
      %v1394 = vmul.f32 %v1316, %v1238
      %v1395 = vmul.f32 %v1317, %v1239
      %v1396 = vmul.f32 %v1318, %v1240
      %v1397 = vmul.f32 %v1319, %v1241
      %v1398 = vmul.f32 %v1320, %v1242
      %v1399 = vmul.f32 %v1321, %v1243
      %v1400 = vmul.f32 %v1322, %v1244
      %v1401 = vmul.f32 %v1323, %v1245
      %v1402 = vmul.f32 %v1324, %v1246
      %v1403 = vmul.f32 %v1325, %v1247
      %v1404 = vmul.f32 %v1326, %v1248
      %v1405 = vmul.f32 %v1327, %v1249
      %v1406 = vmul.f32 %v1328, %v1250
      %v1407 = vmul.f32 %v1329, %v1251
      %v1408 = vmul.f32 %v1330, %v1252
      %v1409 = vmul.f32 %v1331, %v1253
      %v1410 = vmul.f32 %v1332, %v1254
      %v1411 = vmul.f32 %v1333, %v1255
      %v1412 = vmul.f32 %v1334, %v1256
      %v1413 = vmul.f32 %v1335, %v1257
      %v1414 = vmul.f32 %v1336, %v1258
      %v1415 = vmul.f32 %v1337, %v1259
      %v1416 = vmul.f32 %v1338, %v1260
      %v1417 = vmul.f32 %v1339, %v1261
      %v1418 = vmul.f32 %v1340, %v1262
      %v1419 = vmul.f32 %v1341, %v1263
      %v1420 = vmul.f32 %v1342, %v1264
      %v1421 = vmul.f32 %v1343, %v1265
      %v1422 = vmul.f32 %v1344, %v1266
      %v1423 = vmul.f32 %v1345, %v1267
      %v1424 = vmul.f32 %v1346, %v1268
      %v1425 = vmul.f32 %v1347, %v1269
      %v1426 = vmul.f32 %v1348, %v1270
      %v1427 = vmul.f32 %v1349, %v1271
      %v1428 = vmul.f32 %v1350, %v1272
      %v1429 = vmul.f32 %v1351, %v1273
      %v1430 = vmul.f32 %v1352, %v1274
      %v1431 = vmul.f32 %v1353, %v1275
      %v1432 = vmul.f32 %v1354, %v1276
      %v1433 = vmul.f32 %v1355, %v1277
      %v1434 = vmul.f32 %v1356, %v1278
      %v1435 = vmul.f32 %v1357, %v1279
      %v1436 = vmul.f32 %v1358, %v1280
      %v1437 = vmul.f32 %v1359, %v1281
      %v1438 = vmul.f32 %v1360, %v1282
      %v1439 = vmul.f32 %v1361, %v1283
      %v1440 = vmul.f32 %v1362, %v1284
      %v1441 = vmul.f32 %v1363, %v1285
      %v1442 = vmul.f32 %v1364, %v1286
      %v1443 = vmul.f32 %v1365, %v1287
      %v1444 = vmul.f32 %v1366, %v1288
      %v1445 = vmul.f32 %v1367, %v1289
      %v1446 = vmul.f32 %v1368, %v1290
      %v1447 = vmul.f32 %v1369, %v1291
      %v1448 = vmul.f32 %v1370, %v1292
      %v1449 = vmul.f32 %v1371, %v1293
      %v1450 = vmul.f32 %v1372, %v1294
      %v1451 = vmul.f32 %v1373, %v1295
      %v1452 = vmul.f32 %v1374, %v1296
      %v1453 = vmul.f32 %v1375, %v1297
      %v1454 = vmul.f32 %v1376, %v1298
      %v1455 = vmul.f32 %v1377, %v1299
      %v1456 = vmul.f32 %v1378, %v1300
      %v1457 = vmul.f32 %v1379, %v1301
      %v1458 = vmul.f32 %v1380, %v1302
      %v1459 = vmul.f32 %v1381, %v1303
      %v1460 = vmul.f32 %v1382, %v1304
      %v1461 = vmul.f32 %v1383, %v1305
      %v1462 = vmul.f32 %v1384, %v1306
      %v1463 = vmul.f32 %v1385, %v1307
      %v1464 = vmul.f32 %v1386, %v1308
      %v1465 = vmul.f32 %v1387, %v1309
      %v1466 = vmul.f32 %v1388, %v1310
      %v1467 = vld [vmem:[%s210] sm:$0xff]
      %v1468 = vld [vmem:[%s210 + $0x8] sm:$0xff]
      %v1469 = vld [vmem:[%s210 + $0x10] sm:$0xff]
      %v1470 = vld [vmem:[%s210 + $0x18] sm:$0xff]
      %v1471 = vld [vmem:[%s210 + $0x20] sm:$0xff]
      %v1472 = vld [vmem:[%s210 + $0x28] sm:$0xff]
      %v1473 = vld [vmem:[%s210 + $0x30] sm:$0xff]
      %v1474 = vld [vmem:[%s210 + $0x38] sm:$0xff]
      %v1475 = vld [vmem:[%s210 + $0x40] sm:$0xff]
      %v1476 = vld [vmem:[%s210 + $0x48] sm:$0xff]
      %v1477 = vld [vmem:[%s210 + $0x50] sm:$0xff]
      %v1478 = vld [vmem:[%s210 + $0x58] sm:$0xff]
      %v1479 = vld [vmem:[%s210 + $0x60] sm:$0xff]
      %v1480 = vld [vmem:[%s210 + $0x68] sm:$0xff]
      %v1481 = vld [vmem:[%s210 + $0x70] sm:$0xff]
      %v1482 = vld [vmem:[%s210 + $0x78] sm:$0xff]
      %v1483 = vld [vmem:[%s210 + $0x80] sm:$0xff]
      %v1484 = vld [vmem:[%s210 + $0x88] sm:$0xff]
      %v1485 = vld [vmem:[%s210 + $0x90] sm:$0xff]
      %v1486 = vld [vmem:[%s210 + $0x98] sm:$0xff]
      %v1487 = vld [vmem:[%s210 + $0xa0] sm:$0xff]
      %v1488 = vld [vmem:[%s210 + $0xa8] sm:$0xff]
      %v1489 = vld [vmem:[%s210 + $0xb0] sm:$0xff]
      %v1490 = vld [vmem:[%s210 + $0xb8] sm:$0xff]
      %v1491 = vld [vmem:[%s210 + $0xc0] sm:$0xff]
      %v1492 = vld [vmem:[%s210 + $0xc8] sm:$0xff]
      %v1493 = vld [vmem:[%s210 + $0xd0] sm:$0xff]
      %v1494 = vld [vmem:[%s210 + $0xd8] sm:$0xff]
      %v1495 = vld [vmem:[%s210 + $0xe0] sm:$0xff]
      %v1496 = vld [vmem:[%s210 + $0xe8] sm:$0xff]
      %v1497 = vld [vmem:[%s210 + $0xf0] sm:$0xff]
      %v1498 = vld [vmem:[%s210 + $0xf8] sm:$0xff]
      %v1499 = vld [vmem:[%s210 + $0x100] sm:$0xff]
      %v1500 = vld [vmem:[%s210 + $0x108] sm:$0xff]
      %v1501 = vld [vmem:[%s210 + $0x110] sm:$0xff]
      %v1502 = vld [vmem:[%s210 + $0x118] sm:$0xff]
      %v1503 = vld [vmem:[%s210 + $0x120] sm:$0xff]
      %v1504 = vld [vmem:[%s210 + $0x128] sm:$0xff]
      %v1505 = vld [vmem:[%s210 + $0x130] sm:$0xff]
      %v1506 = vld [vmem:[%s210 + $0x138] sm:$0xff]
      %v1507 = vld [vmem:[%s210 + $0x140] sm:$0xff]
      %v1508 = vld [vmem:[%s210 + $0x148] sm:$0xff]
      %v1509 = vld [vmem:[%s210 + $0x150] sm:$0xff]
      %v1510 = vld [vmem:[%s210 + $0x158] sm:$0xff]
      %v1511 = vld [vmem:[%s210 + $0x160] sm:$0xff]
      %v1512 = vld [vmem:[%s210 + $0x168] sm:$0xff]
      %v1513 = vld [vmem:[%s210 + $0x170] sm:$0xff]
      %v1514 = vld [vmem:[%s210 + $0x178] sm:$0xff]
      %v1515 = vld [vmem:[%s210 + $0x180] sm:$0xff]
      %v1516 = vld [vmem:[%s210 + $0x188] sm:$0xff]
      %v1517 = vld [vmem:[%s210 + $0x190] sm:$0xff]
      %v1518 = vld [vmem:[%s210 + $0x198] sm:$0xff]
      %v1519 = vld [vmem:[%s210 + $0x1a0] sm:$0xff]
      %v1520 = vld [vmem:[%s210 + $0x1a8] sm:$0xff]
      %v1521 = vld [vmem:[%s210 + $0x1b0] sm:$0xff]
      %v1522 = vld [vmem:[%s210 + $0x1b8] sm:$0xff]
      %v1523 = vld [vmem:[%s210 + $0x1c0] sm:$0xff]
      %v1524 = vld [vmem:[%s210 + $0x1c8] sm:$0xff]
      %v1525 = vld [vmem:[%s210 + $0x1d0] sm:$0xff]
      %v1526 = vld [vmem:[%s210 + $0x1d8] sm:$0xff]
      %v1527 = vld [vmem:[%s210 + $0x1e0] sm:$0xff]
      %v1528 = vld [vmem:[%s210 + $0x1e8] sm:$0xff]
      %v1529 = vld [vmem:[%s210 + $0x1f0] sm:$0xff]
      %v1530 = vld [vmem:[%s210 + $0x1f8] sm:$0xff]
      %v1531 = vld [vmem:[%s210 + $0x200] sm:$0xff]
      %v1532 = vld [vmem:[%s210 + $0x208] sm:$0xff]
      %v1533 = vld [vmem:[%s210 + $0x210] sm:$0xff]
      %v1534 = vld [vmem:[%s210 + $0x218] sm:$0xff]
      %v1535 = vld [vmem:[%s210 + $0x220] sm:$0xff]
      %v1536 = vld [vmem:[%s210 + $0x228] sm:$0xff]
      %v1537 = vld [vmem:[%s210 + $0x230] sm:$0xff]
      %v1538 = vld [vmem:[%s210 + $0x238] sm:$0xff]
      %v1539 = vld [vmem:[%s210 + $0x240] sm:$0xff]
      %v1540 = vld [vmem:[%s210 + $0x248] sm:$0xff]
      %v1541 = vld [vmem:[%s210 + $0x250] sm:$0xff]
      %v1542 = vld [vmem:[%s210 + $0x258] sm:$0xff]
      %v1543 = vld [vmem:[%s210 + $0x260] sm:$0xff]
      %v1544 = vld [vmem:[%s210 + $0x268] sm:$0xff]
      %v1545 = vmul.f32 %v843, %v1389
      %v1546 = vmul.f32 %v844, %v1390
      %v1547 = vmul.f32 %v845, %v1391
      %v1548 = vmul.f32 %v846, %v1392
      %v1549 = vmul.f32 %v847, %v1393
      %v1550 = vmul.f32 %v848, %v1394
      %v1551 = vmul.f32 %v849, %v1395
      %v1552 = vmul.f32 %v850, %v1396
      %v1553 = vmul.f32 %v851, %v1397
      %v1554 = vmul.f32 %v852, %v1398
      %v1555 = vmul.f32 %v853, %v1399
      %v1556 = vmul.f32 %v854, %v1400
      %v1557 = vmul.f32 %v855, %v1401
      %v1558 = vmul.f32 %v856, %v1402
      %v1559 = vmul.f32 %v857, %v1403
      %v1560 = vmul.f32 %v858, %v1404
      %v1561 = vmul.f32 %v859, %v1405
      %v1562 = vmul.f32 %v860, %v1406
      %v1563 = vmul.f32 %v861, %v1407
      %v1564 = vmul.f32 %v862, %v1408
      %v1565 = vmul.f32 %v863, %v1409
      %v1566 = vmul.f32 %v864, %v1410
      %v1567 = vmul.f32 %v865, %v1411
      %v1568 = vmul.f32 %v866, %v1412
      %v1569 = vmul.f32 %v867, %v1413
      %v1570 = vmul.f32 %v868, %v1414
      %v1571 = vmul.f32 %v869, %v1415
      %v1572 = vmul.f32 %v870, %v1416
      %v1573 = vmul.f32 %v871, %v1417
      %v1574 = vmul.f32 %v872, %v1418
      %v1575 = vmul.f32 %v873, %v1419
      %v1576 = vmul.f32 %v874, %v1420
      %v1577 = vmul.f32 %v875, %v1421
      %v1578 = vmul.f32 %v876, %v1422
      %v1579 = vmul.f32 %v877, %v1423
      %v1580 = vmul.f32 %v878, %v1424
      %v1581 = vmul.f32 %v879, %v1425
      %v1582 = vmul.f32 %v880, %v1426
      %v1583 = vmul.f32 %v881, %v1427
      %v1584 = vmul.f32 %v882, %v1428
      %v1585 = vmul.f32 %v883, %v1429
      %v1586 = vmul.f32 %v884, %v1430
      %v1587 = vmul.f32 %v885, %v1431
      %v1588 = vmul.f32 %v886, %v1432
      %v1589 = vmul.f32 %v887, %v1433
      %v1590 = vmul.f32 %v888, %v1434
      %v1591 = vmul.f32 %v889, %v1435
      %v1592 = vmul.f32 %v890, %v1436
      %v1593 = vmul.f32 %v891, %v1437
      %v1594 = vmul.f32 %v892, %v1438
      %v1595 = vmul.f32 %v893, %v1439
      %v1596 = vmul.f32 %v894, %v1440
      %v1597 = vmul.f32 %v895, %v1441
      %v1598 = vmul.f32 %v896, %v1442
      %v1599 = vmul.f32 %v897, %v1443
      %v1600 = vmul.f32 %v898, %v1444
      %v1601 = vmul.f32 %v899, %v1445
      %v1602 = vmul.f32 %v900, %v1446
      %v1603 = vmul.f32 %v901, %v1447
      %v1604 = vmul.f32 %v902, %v1448
      %v1605 = vmul.f32 %v903, %v1449
      %v1606 = vmul.f32 %v904, %v1450
      %v1607 = vmul.f32 %v905, %v1451
      %v1608 = vmul.f32 %v906, %v1452
      %v1609 = vmul.f32 %v907, %v1453
      %v1610 = vmul.f32 %v908, %v1454
      %v1611 = vmul.f32 %v909, %v1455
      %v1612 = vmul.f32 %v910, %v1456
      %v1613 = vmul.f32 %v911, %v1457
      %v1614 = vmul.f32 %v912, %v1458
      %v1615 = vmul.f32 %v913, %v1459
      %v1616 = vmul.f32 %v914, %v1460
      %v1617 = vmul.f32 %v915, %v1461
      %v1618 = vmul.f32 %v916, %v1462
      %v1619 = vmul.f32 %v917, %v1463
      %v1620 = vmul.f32 %v918, %v1464
      %v1621 = vmul.f32 %v919, %v1465
      %v1622 = vmul.f32 %v920, %v1466
      %v1623 = vsub.f32 %v1467, %v1545
      %v1624 = vsub.f32 %v1468, %v1546
      %v1625 = vsub.f32 %v1469, %v1547
      %v1626 = vsub.f32 %v1470, %v1548
      %v1627 = vsub.f32 %v1471, %v1549
      %v1628 = vsub.f32 %v1472, %v1550
      %v1629 = vsub.f32 %v1473, %v1551
      %v1630 = vsub.f32 %v1474, %v1552
      %v1631 = vsub.f32 %v1475, %v1553
      %v1632 = vsub.f32 %v1476, %v1554
      %v1633 = vsub.f32 %v1477, %v1555
      %v1634 = vsub.f32 %v1478, %v1556
      %v1635 = vsub.f32 %v1479, %v1557
      %v1636 = vsub.f32 %v1480, %v1558
      %v1637 = vsub.f32 %v1481, %v1559
      %v1638 = vsub.f32 %v1482, %v1560
      %v1639 = vsub.f32 %v1483, %v1561
      %v1640 = vsub.f32 %v1484, %v1562
      %v1641 = vsub.f32 %v1485, %v1563
      %v1642 = vsub.f32 %v1486, %v1564
      %v1643 = vsub.f32 %v1487, %v1565
      %v1644 = vsub.f32 %v1488, %v1566
      %v1645 = vsub.f32 %v1489, %v1567
      %v1646 = vsub.f32 %v1490, %v1568
      %v1647 = vsub.f32 %v1491, %v1569
      %v1648 = vsub.f32 %v1492, %v1570
      %v1649 = vsub.f32 %v1493, %v1571
      %v1650 = vsub.f32 %v1494, %v1572
      %v1651 = vsub.f32 %v1495, %v1573
      %v1652 = vsub.f32 %v1496, %v1574
      %v1653 = vsub.f32 %v1497, %v1575
      %v1654 = vsub.f32 %v1498, %v1576
      %v1655 = vsub.f32 %v1499, %v1577
      %v1656 = vsub.f32 %v1500, %v1578
      %v1657 = vsub.f32 %v1501, %v1579
      %v1658 = vsub.f32 %v1502, %v1580
      %v1659 = vsub.f32 %v1503, %v1581
      %v1660 = vsub.f32 %v1504, %v1582
      %v1661 = vsub.f32 %v1505, %v1583
      %v1662 = vsub.f32 %v1506, %v1584
      %v1663 = vsub.f32 %v1507, %v1585
      %v1664 = vsub.f32 %v1508, %v1586
      %v1665 = vsub.f32 %v1509, %v1587
      %v1666 = vsub.f32 %v1510, %v1588
      %v1667 = vsub.f32 %v1511, %v1589
      %v1668 = vsub.f32 %v1512, %v1590
      %v1669 = vsub.f32 %v1513, %v1591
      %v1670 = vsub.f32 %v1514, %v1592
      %v1671 = vsub.f32 %v1515, %v1593
      %v1672 = vsub.f32 %v1516, %v1594
      %v1673 = vsub.f32 %v1517, %v1595
      %v1674 = vsub.f32 %v1518, %v1596
      %v1675 = vsub.f32 %v1519, %v1597
      %v1676 = vsub.f32 %v1520, %v1598
      %v1677 = vsub.f32 %v1521, %v1599
      %v1678 = vsub.f32 %v1522, %v1600
      %v1679 = vsub.f32 %v1523, %v1601
      %v1680 = vsub.f32 %v1524, %v1602
      %v1681 = vsub.f32 %v1525, %v1603
      %v1682 = vsub.f32 %v1526, %v1604
      %v1683 = vsub.f32 %v1527, %v1605
      %v1684 = vsub.f32 %v1528, %v1606
      %v1685 = vsub.f32 %v1529, %v1607
      %v1686 = vsub.f32 %v1530, %v1608
      %v1687 = vsub.f32 %v1531, %v1609
      %v1688 = vsub.f32 %v1532, %v1610
      %v1689 = vsub.f32 %v1533, %v1611
      %v1690 = vsub.f32 %v1534, %v1612
      %v1691 = vsub.f32 %v1535, %v1613
      %v1692 = vsub.f32 %v1536, %v1614
      %v1693 = vsub.f32 %v1537, %v1615
      %v1694 = vsub.f32 %v1538, %v1616
      %v1695 = vsub.f32 %v1539, %v1617
      %v1696 = vsub.f32 %v1540, %v1618
      %v1697 = vsub.f32 %v1541, %v1619
      %v1698 = vsub.f32 %v1542, %v1620
      %v1699 = vsub.f32 %v1543, %v1621
      %v1700 = vsub.f32 %v1544, %v1622
      %1702 = vset.pattern.permute.xlu0 0
      %1703 = vperm.xlu0 %1702, %v1389
      %v1704 = vpop.permute.xlu0 %1703
      %1707 = vset.pattern.permute.xlu0 0
      %1708 = vperm.xlu0 %1707, %v1390
      %v1709 = vpop.permute.xlu0 %1708
      %1712 = vset.pattern.permute.xlu0 0
      %1713 = vperm.xlu0 %1712, %v1391
      %v1714 = vpop.permute.xlu0 %1713
      %1717 = vset.pattern.permute.xlu0 0
      %1718 = vperm.xlu0 %1717, %v1392
      %v1719 = vpop.permute.xlu0 %1718
      %1722 = vset.pattern.permute.xlu0 0
      %1723 = vperm.xlu0 %1722, %v1393
      %v1724 = vpop.permute.xlu0 %1723
      %1727 = vset.pattern.permute.xlu0 0
      %1728 = vperm.xlu0 %1727, %v1394
      %v1729 = vpop.permute.xlu0 %1728
      %1732 = vset.pattern.permute.xlu0 0
      %1733 = vperm.xlu0 %1732, %v1395
      %v1734 = vpop.permute.xlu0 %1733
      %1737 = vset.pattern.permute.xlu0 0
      %1738 = vperm.xlu0 %1737, %v1396
      %v1739 = vpop.permute.xlu0 %1738
      %1742 = vset.pattern.permute.xlu0 0
      %1743 = vperm.xlu0 %1742, %v1397
      %v1744 = vpop.permute.xlu0 %1743
      %1747 = vset.pattern.permute.xlu0 0
      %1748 = vperm.xlu0 %1747, %v1398
      %v1749 = vpop.permute.xlu0 %1748
      %1752 = vset.pattern.permute.xlu0 0
      %1753 = vperm.xlu0 %1752, %v1399
      %v1754 = vpop.permute.xlu0 %1753
      %1757 = vset.pattern.permute.xlu0 0
      %1758 = vperm.xlu0 %1757, %v1400
      %v1759 = vpop.permute.xlu0 %1758
      %1762 = vset.pattern.permute.xlu0 0
      %1763 = vperm.xlu0 %1762, %v1401
      %v1764 = vpop.permute.xlu0 %1763
      %1767 = vset.pattern.permute.xlu0 0
      %1768 = vperm.xlu0 %1767, %v1402
      %v1769 = vpop.permute.xlu0 %1768
      %1772 = vset.pattern.permute.xlu0 0
      %1773 = vperm.xlu0 %1772, %v1403
      %v1774 = vpop.permute.xlu0 %1773
      %1777 = vset.pattern.permute.xlu0 0
      %1778 = vperm.xlu0 %1777, %v1404
      %v1779 = vpop.permute.xlu0 %1778
      %1782 = vset.pattern.permute.xlu0 0
      %1783 = vperm.xlu0 %1782, %v1405
      %v1784 = vpop.permute.xlu0 %1783
      %1787 = vset.pattern.permute.xlu0 0
      %1788 = vperm.xlu0 %1787, %v1406
      %v1789 = vpop.permute.xlu0 %1788
      %1792 = vset.pattern.permute.xlu0 0
      %1793 = vperm.xlu0 %1792, %v1407
      %v1794 = vpop.permute.xlu0 %1793
      %1797 = vset.pattern.permute.xlu0 0
      %1798 = vperm.xlu0 %1797, %v1408
      %v1799 = vpop.permute.xlu0 %1798
      %1802 = vset.pattern.permute.xlu0 0
      %1803 = vperm.xlu0 %1802, %v1409
      %v1804 = vpop.permute.xlu0 %1803
      %1807 = vset.pattern.permute.xlu0 0
      %1808 = vperm.xlu0 %1807, %v1410
      %v1809 = vpop.permute.xlu0 %1808
      %1812 = vset.pattern.permute.xlu0 0
      %1813 = vperm.xlu0 %1812, %v1411
      %v1814 = vpop.permute.xlu0 %1813
      %1817 = vset.pattern.permute.xlu0 0
      %1818 = vperm.xlu0 %1817, %v1412
      %v1819 = vpop.permute.xlu0 %1818
      %1822 = vset.pattern.permute.xlu0 0
      %1823 = vperm.xlu0 %1822, %v1413
      %v1824 = vpop.permute.xlu0 %1823
      %1827 = vset.pattern.permute.xlu0 0
      %1828 = vperm.xlu0 %1827, %v1414
      %v1829 = vpop.permute.xlu0 %1828
      %1832 = vset.pattern.permute.xlu0 0
      %1833 = vperm.xlu0 %1832, %v1415
      %v1834 = vpop.permute.xlu0 %1833
      %1837 = vset.pattern.permute.xlu0 0
      %1838 = vperm.xlu0 %1837, %v1416
      %v1839 = vpop.permute.xlu0 %1838
      %1842 = vset.pattern.permute.xlu0 0
      %1843 = vperm.xlu0 %1842, %v1417
      %v1844 = vpop.permute.xlu0 %1843
      %1847 = vset.pattern.permute.xlu0 0
      %1848 = vperm.xlu0 %1847, %v1418
      %v1849 = vpop.permute.xlu0 %1848
      %1852 = vset.pattern.permute.xlu0 0
      %1853 = vperm.xlu0 %1852, %v1419
      %v1854 = vpop.permute.xlu0 %1853
      %1857 = vset.pattern.permute.xlu0 0
      %1858 = vperm.xlu0 %1857, %v1420
      %v1859 = vpop.permute.xlu0 %1858
      %1862 = vset.pattern.permute.xlu0 0
      %1863 = vperm.xlu0 %1862, %v1421
      %v1864 = vpop.permute.xlu0 %1863
      %1867 = vset.pattern.permute.xlu0 0
      %1868 = vperm.xlu0 %1867, %v1422
      %v1869 = vpop.permute.xlu0 %1868
      %1872 = vset.pattern.permute.xlu0 0
      %1873 = vperm.xlu0 %1872, %v1423
      %v1874 = vpop.permute.xlu0 %1873
      %1877 = vset.pattern.permute.xlu0 0
      %1878 = vperm.xlu0 %1877, %v1424
      %v1879 = vpop.permute.xlu0 %1878
      %1882 = vset.pattern.permute.xlu0 0
      %1883 = vperm.xlu0 %1882, %v1425
      %v1884 = vpop.permute.xlu0 %1883
      %1887 = vset.pattern.permute.xlu0 0
      %1888 = vperm.xlu0 %1887, %v1426
      %v1889 = vpop.permute.xlu0 %1888
      %1892 = vset.pattern.permute.xlu0 0
      %1893 = vperm.xlu0 %1892, %v1427
      %v1894 = vpop.permute.xlu0 %1893
      %1897 = vset.pattern.permute.xlu0 0
      %1898 = vperm.xlu0 %1897, %v1428
      %v1899 = vpop.permute.xlu0 %1898
      %1902 = vset.pattern.permute.xlu0 0
      %1903 = vperm.xlu0 %1902, %v1429
      %v1904 = vpop.permute.xlu0 %1903
      %1907 = vset.pattern.permute.xlu0 0
      %1908 = vperm.xlu0 %1907, %v1430
      %v1909 = vpop.permute.xlu0 %1908
      %1912 = vset.pattern.permute.xlu0 0
      %1913 = vperm.xlu0 %1912, %v1431
      %v1914 = vpop.permute.xlu0 %1913
      %1917 = vset.pattern.permute.xlu0 0
      %1918 = vperm.xlu0 %1917, %v1432
      %v1919 = vpop.permute.xlu0 %1918
      %1922 = vset.pattern.permute.xlu0 0
      %1923 = vperm.xlu0 %1922, %v1433
      %v1924 = vpop.permute.xlu0 %1923
      %1927 = vset.pattern.permute.xlu0 0
      %1928 = vperm.xlu0 %1927, %v1434
      %v1929 = vpop.permute.xlu0 %1928
      %1932 = vset.pattern.permute.xlu0 0
      %1933 = vperm.xlu0 %1932, %v1435
      %v1934 = vpop.permute.xlu0 %1933
      %1937 = vset.pattern.permute.xlu0 0
      %1938 = vperm.xlu0 %1937, %v1436
      %v1939 = vpop.permute.xlu0 %1938
      %1942 = vset.pattern.permute.xlu0 0
      %1943 = vperm.xlu0 %1942, %v1437
      %v1944 = vpop.permute.xlu0 %1943
      %1947 = vset.pattern.permute.xlu0 0
      %1948 = vperm.xlu0 %1947, %v1438
      %v1949 = vpop.permute.xlu0 %1948
      %1952 = vset.pattern.permute.xlu0 0
      %1953 = vperm.xlu0 %1952, %v1439
      %v1954 = vpop.permute.xlu0 %1953
      %1957 = vset.pattern.permute.xlu0 0
      %1958 = vperm.xlu0 %1957, %v1440
      %v1959 = vpop.permute.xlu0 %1958
      %1962 = vset.pattern.permute.xlu0 0
      %1963 = vperm.xlu0 %1962, %v1441
      %v1964 = vpop.permute.xlu0 %1963
      %1967 = vset.pattern.permute.xlu0 0
      %1968 = vperm.xlu0 %1967, %v1442
      %v1969 = vpop.permute.xlu0 %1968
      %1972 = vset.pattern.permute.xlu0 0
      %1973 = vperm.xlu0 %1972, %v1443
      %v1974 = vpop.permute.xlu0 %1973
      %1977 = vset.pattern.permute.xlu0 0
      %1978 = vperm.xlu0 %1977, %v1444
      %v1979 = vpop.permute.xlu0 %1978
      %1982 = vset.pattern.permute.xlu0 0
      %1983 = vperm.xlu0 %1982, %v1445
      %v1984 = vpop.permute.xlu0 %1983
      %1987 = vset.pattern.permute.xlu0 0
      %1988 = vperm.xlu0 %1987, %v1446
      %v1989 = vpop.permute.xlu0 %1988
      %1992 = vset.pattern.permute.xlu0 0
      %1993 = vperm.xlu0 %1992, %v1447
      %v1994 = vpop.permute.xlu0 %1993
      %1997 = vset.pattern.permute.xlu0 0
      %1998 = vperm.xlu0 %1997, %v1448
      %v1999 = vpop.permute.xlu0 %1998
      %2002 = vset.pattern.permute.xlu0 0
      %2003 = vperm.xlu0 %2002, %v1449
      %v2004 = vpop.permute.xlu0 %2003
      %2007 = vset.pattern.permute.xlu0 0
      %2008 = vperm.xlu0 %2007, %v1450
      %v2009 = vpop.permute.xlu0 %2008
      %2012 = vset.pattern.permute.xlu0 0
      %2013 = vperm.xlu0 %2012, %v1451
      %v2014 = vpop.permute.xlu0 %2013
      %2017 = vset.pattern.permute.xlu0 0
      %2018 = vperm.xlu0 %2017, %v1452
      %v2019 = vpop.permute.xlu0 %2018
      %2022 = vset.pattern.permute.xlu0 0
      %2023 = vperm.xlu0 %2022, %v1453
      %v2024 = vpop.permute.xlu0 %2023
      %2027 = vset.pattern.permute.xlu0 0
      %2028 = vperm.xlu0 %2027, %v1454
      %v2029 = vpop.permute.xlu0 %2028
      %2032 = vset.pattern.permute.xlu0 0
      %2033 = vperm.xlu0 %2032, %v1455
      %v2034 = vpop.permute.xlu0 %2033
      %2037 = vset.pattern.permute.xlu0 0
      %2038 = vperm.xlu0 %2037, %v1456
      %v2039 = vpop.permute.xlu0 %2038
      %2042 = vset.pattern.permute.xlu0 0
      %2043 = vperm.xlu0 %2042, %v1457
      %v2044 = vpop.permute.xlu0 %2043
      %2047 = vset.pattern.permute.xlu0 0
      %2048 = vperm.xlu0 %2047, %v1458
      %v2049 = vpop.permute.xlu0 %2048
      %2052 = vset.pattern.permute.xlu0 0
      %2053 = vperm.xlu0 %2052, %v1459
      %v2054 = vpop.permute.xlu0 %2053
      %2057 = vset.pattern.permute.xlu0 0
      %2058 = vperm.xlu0 %2057, %v1460
      %v2059 = vpop.permute.xlu0 %2058
      %2062 = vset.pattern.permute.xlu0 0
      %2063 = vperm.xlu0 %2062, %v1461
      %v2064 = vpop.permute.xlu0 %2063
      %2067 = vset.pattern.permute.xlu0 0
      %2068 = vperm.xlu0 %2067, %v1462
      %v2069 = vpop.permute.xlu0 %2068
      %2072 = vset.pattern.permute.xlu0 0
      %2073 = vperm.xlu0 %2072, %v1463
      %v2074 = vpop.permute.xlu0 %2073
      %2077 = vset.pattern.permute.xlu0 0
      %2078 = vperm.xlu0 %2077, %v1464
      %v2079 = vpop.permute.xlu0 %2078
      %2082 = vset.pattern.permute.xlu0 0
      %2083 = vperm.xlu0 %2082, %v1465
      %v2084 = vpop.permute.xlu0 %2083
      %2087 = vset.pattern.permute.xlu0 0
      %2088 = vperm.xlu0 %2087, %v1466
      %v2089 = vpop.permute.xlu0 %2088
      %v2091 = vmul.f32 %v218, %v1704
      %v2092 = vmul.f32 %v219, %v1709
      %v2093 = vmul.f32 %v220, %v1714
      %v2094 = vmul.f32 %v221, %v1719
      %v2095 = vmul.f32 %v222, %v1724
      %v2096 = vmul.f32 %v223, %v1729
      %v2097 = vmul.f32 %v224, %v1734
      %v2098 = vmul.f32 %v225, %v1739
      %v2099 = vmul.f32 %v226, %v1744
      %v2100 = vmul.f32 %v227, %v1749
      %v2101 = vmul.f32 %v228, %v1754
      %v2102 = vmul.f32 %v229, %v1759
      %v2103 = vmul.f32 %v230, %v1764
      %v2104 = vmul.f32 %v231, %v1769
      %v2105 = vmul.f32 %v232, %v1774
      %v2106 = vmul.f32 %v233, %v1779
      %v2107 = vmul.f32 %v234, %v1784
      %v2108 = vmul.f32 %v235, %v1789
      %v2109 = vmul.f32 %v236, %v1794
      %v2110 = vmul.f32 %v237, %v1799
      %v2111 = vmul.f32 %v238, %v1804
      %v2112 = vmul.f32 %v239, %v1809
      %v2113 = vmul.f32 %v240, %v1814
      %v2114 = vmul.f32 %v241, %v1819
      %v2115 = vmul.f32 %v242, %v1824
      %v2116 = vmul.f32 %v243, %v1829
      %v2117 = vmul.f32 %v244, %v1834
      %v2118 = vmul.f32 %v245, %v1839
      %v2119 = vmul.f32 %v246, %v1844
      %v2120 = vmul.f32 %v247, %v1849
      %v2121 = vmul.f32 %v248, %v1854
      %v2122 = vmul.f32 %v249, %v1859
      %v2123 = vmul.f32 %v250, %v1864
      %v2124 = vmul.f32 %v251, %v1869
      %v2125 = vmul.f32 %v252, %v1874
      %v2126 = vmul.f32 %v253, %v1879
      %v2127 = vmul.f32 %v254, %v1884
      %v2128 = vmul.f32 %v255, %v1889
      %v2129 = vmul.f32 %v256, %v1894
      %v2130 = vmul.f32 %v257, %v1899
      %v2131 = vmul.f32 %v258, %v1904
      %v2132 = vmul.f32 %v259, %v1909
      %v2133 = vmul.f32 %v260, %v1914
      %v2134 = vmul.f32 %v261, %v1919
      %v2135 = vmul.f32 %v262, %v1924
      %v2136 = vmul.f32 %v263, %v1929
      %v2137 = vmul.f32 %v264, %v1934
      %v2138 = vmul.f32 %v265, %v1939
      %v2139 = vmul.f32 %v266, %v1944
      %v2140 = vmul.f32 %v267, %v1949
      %v2141 = vmul.f32 %v268, %v1954
      %v2142 = vmul.f32 %v269, %v1959
      %v2143 = vmul.f32 %v270, %v1964
      %v2144 = vmul.f32 %v271, %v1969
      %v2145 = vmul.f32 %v272, %v1974
      %v2146 = vmul.f32 %v273, %v1979
      %v2147 = vmul.f32 %v274, %v1984
      %v2148 = vmul.f32 %v275, %v1989
      %v2149 = vmul.f32 %v276, %v1994
      %v2150 = vmul.f32 %v277, %v1999
      %v2151 = vmul.f32 %v278, %v2004
      %v2152 = vmul.f32 %v279, %v2009
      %v2153 = vmul.f32 %v280, %v2014
      %v2154 = vmul.f32 %v281, %v2019
      %v2155 = vmul.f32 %v282, %v2024
      %v2156 = vmul.f32 %v283, %v2029
      %v2157 = vmul.f32 %v284, %v2034
      %v2158 = vmul.f32 %v285, %v2039
      %v2159 = vmul.f32 %v286, %v2044
      %v2160 = vmul.f32 %v287, %v2049
      %v2161 = vmul.f32 %v288, %v2054
      %v2162 = vmul.f32 %v289, %v2059
      %v2163 = vmul.f32 %v290, %v2064
      %v2164 = vmul.f32 %v291, %v2069
      %v2165 = vmul.f32 %v292, %v2074
      %v2166 = vmul.f32 %v293, %v2079
      %v2167 = vmul.f32 %v294, %v2084
      %v2168 = vmul.f32 %v295, %v2089
      %2170 = vset.pattern.permute.xlu0 0
      %2171 = vperm.xlu0 %2170, %v1623
      %v2172 = vpop.permute.xlu0 %2171
      %2175 = vset.pattern.permute.xlu0 0
      %2176 = vperm.xlu0 %2175, %v1624
      %v2177 = vpop.permute.xlu0 %2176
      %2180 = vset.pattern.permute.xlu0 0
      %2181 = vperm.xlu0 %2180, %v1625
      %v2182 = vpop.permute.xlu0 %2181
      %2185 = vset.pattern.permute.xlu0 0
      %2186 = vperm.xlu0 %2185, %v1626
      %v2187 = vpop.permute.xlu0 %2186
      %2190 = vset.pattern.permute.xlu0 0
      %2191 = vperm.xlu0 %2190, %v1627
      %v2192 = vpop.permute.xlu0 %2191
      %2195 = vset.pattern.permute.xlu0 0
      %2196 = vperm.xlu0 %2195, %v1628
      %v2197 = vpop.permute.xlu0 %2196
      %2200 = vset.pattern.permute.xlu0 0
      %2201 = vperm.xlu0 %2200, %v1629
      %v2202 = vpop.permute.xlu0 %2201
      %2205 = vset.pattern.permute.xlu0 0
      %2206 = vperm.xlu0 %2205, %v1630
      %v2207 = vpop.permute.xlu0 %2206
      %2210 = vset.pattern.permute.xlu0 0
      %2211 = vperm.xlu0 %2210, %v1631
      %v2212 = vpop.permute.xlu0 %2211
      %2215 = vset.pattern.permute.xlu0 0
      %2216 = vperm.xlu0 %2215, %v1632
      %v2217 = vpop.permute.xlu0 %2216
      %2220 = vset.pattern.permute.xlu0 0
      %2221 = vperm.xlu0 %2220, %v1633
      %v2222 = vpop.permute.xlu0 %2221
      %2225 = vset.pattern.permute.xlu0 0
      %2226 = vperm.xlu0 %2225, %v1634
      %v2227 = vpop.permute.xlu0 %2226
      %2230 = vset.pattern.permute.xlu0 0
      %2231 = vperm.xlu0 %2230, %v1635
      %v2232 = vpop.permute.xlu0 %2231
      %2235 = vset.pattern.permute.xlu0 0
      %2236 = vperm.xlu0 %2235, %v1636
      %v2237 = vpop.permute.xlu0 %2236
      %2240 = vset.pattern.permute.xlu0 0
      %2241 = vperm.xlu0 %2240, %v1637
      %v2242 = vpop.permute.xlu0 %2241
      %2245 = vset.pattern.permute.xlu0 0
      %2246 = vperm.xlu0 %2245, %v1638
      %v2247 = vpop.permute.xlu0 %2246
      %2250 = vset.pattern.permute.xlu0 0
      %2251 = vperm.xlu0 %2250, %v1639
      %v2252 = vpop.permute.xlu0 %2251
      %2255 = vset.pattern.permute.xlu0 0
      %2256 = vperm.xlu0 %2255, %v1640
      %v2257 = vpop.permute.xlu0 %2256
      %2260 = vset.pattern.permute.xlu0 0
      %2261 = vperm.xlu0 %2260, %v1641
      %v2262 = vpop.permute.xlu0 %2261
      %2265 = vset.pattern.permute.xlu0 0
      %2266 = vperm.xlu0 %2265, %v1642
      %v2267 = vpop.permute.xlu0 %2266
      %2270 = vset.pattern.permute.xlu0 0
      %2271 = vperm.xlu0 %2270, %v1643
      %v2272 = vpop.permute.xlu0 %2271
      %2275 = vset.pattern.permute.xlu0 0
      %2276 = vperm.xlu0 %2275, %v1644
      %v2277 = vpop.permute.xlu0 %2276
      %2280 = vset.pattern.permute.xlu0 0
      %2281 = vperm.xlu0 %2280, %v1645
      %v2282 = vpop.permute.xlu0 %2281
      %2285 = vset.pattern.permute.xlu0 0
      %2286 = vperm.xlu0 %2285, %v1646
      %v2287 = vpop.permute.xlu0 %2286
      %2290 = vset.pattern.permute.xlu0 0
      %2291 = vperm.xlu0 %2290, %v1647
      %v2292 = vpop.permute.xlu0 %2291
      %2295 = vset.pattern.permute.xlu0 0
      %2296 = vperm.xlu0 %2295, %v1648
      %v2297 = vpop.permute.xlu0 %2296
      %2300 = vset.pattern.permute.xlu0 0
      %2301 = vperm.xlu0 %2300, %v1649
      %v2302 = vpop.permute.xlu0 %2301
      %2305 = vset.pattern.permute.xlu0 0
      %2306 = vperm.xlu0 %2305, %v1650
      %v2307 = vpop.permute.xlu0 %2306
      %2310 = vset.pattern.permute.xlu0 0
      %2311 = vperm.xlu0 %2310, %v1651
      %v2312 = vpop.permute.xlu0 %2311
      %2315 = vset.pattern.permute.xlu0 0
      %2316 = vperm.xlu0 %2315, %v1652
      %v2317 = vpop.permute.xlu0 %2316
      %2320 = vset.pattern.permute.xlu0 0
      %2321 = vperm.xlu0 %2320, %v1653
      %v2322 = vpop.permute.xlu0 %2321
      %2325 = vset.pattern.permute.xlu0 0
      %2326 = vperm.xlu0 %2325, %v1654
      %v2327 = vpop.permute.xlu0 %2326
      %2330 = vset.pattern.permute.xlu0 0
      %2331 = vperm.xlu0 %2330, %v1655
      %v2332 = vpop.permute.xlu0 %2331
      %2335 = vset.pattern.permute.xlu0 0
      %2336 = vperm.xlu0 %2335, %v1656
      %v2337 = vpop.permute.xlu0 %2336
      %2340 = vset.pattern.permute.xlu0 0
      %2341 = vperm.xlu0 %2340, %v1657
      %v2342 = vpop.permute.xlu0 %2341
      %2345 = vset.pattern.permute.xlu0 0
      %2346 = vperm.xlu0 %2345, %v1658
      %v2347 = vpop.permute.xlu0 %2346
      %2350 = vset.pattern.permute.xlu0 0
      %2351 = vperm.xlu0 %2350, %v1659
      %v2352 = vpop.permute.xlu0 %2351
      %2355 = vset.pattern.permute.xlu0 0
      %2356 = vperm.xlu0 %2355, %v1660
      %v2357 = vpop.permute.xlu0 %2356
      %2360 = vset.pattern.permute.xlu0 0
      %2361 = vperm.xlu0 %2360, %v1661
      %v2362 = vpop.permute.xlu0 %2361
      %2365 = vset.pattern.permute.xlu0 0
      %2366 = vperm.xlu0 %2365, %v1662
      %v2367 = vpop.permute.xlu0 %2366
      %2370 = vset.pattern.permute.xlu0 0
      %2371 = vperm.xlu0 %2370, %v1663
      %v2372 = vpop.permute.xlu0 %2371
      %2375 = vset.pattern.permute.xlu0 0
      %2376 = vperm.xlu0 %2375, %v1664
      %v2377 = vpop.permute.xlu0 %2376
      %2380 = vset.pattern.permute.xlu0 0
      %2381 = vperm.xlu0 %2380, %v1665
      %v2382 = vpop.permute.xlu0 %2381
      %2385 = vset.pattern.permute.xlu0 0
      %2386 = vperm.xlu0 %2385, %v1666
      %v2387 = vpop.permute.xlu0 %2386
      %2390 = vset.pattern.permute.xlu0 0
      %2391 = vperm.xlu0 %2390, %v1667
      %v2392 = vpop.permute.xlu0 %2391
      %2395 = vset.pattern.permute.xlu0 0
      %2396 = vperm.xlu0 %2395, %v1668
      %v2397 = vpop.permute.xlu0 %2396
      %2400 = vset.pattern.permute.xlu0 0
      %2401 = vperm.xlu0 %2400, %v1669
      %v2402 = vpop.permute.xlu0 %2401
      %2405 = vset.pattern.permute.xlu0 0
      %2406 = vperm.xlu0 %2405, %v1670
      %v2407 = vpop.permute.xlu0 %2406
      %2410 = vset.pattern.permute.xlu0 0
      %2411 = vperm.xlu0 %2410, %v1671
      %v2412 = vpop.permute.xlu0 %2411
      %2415 = vset.pattern.permute.xlu0 0
      %2416 = vperm.xlu0 %2415, %v1672
      %v2417 = vpop.permute.xlu0 %2416
      %2420 = vset.pattern.permute.xlu0 0
      %2421 = vperm.xlu0 %2420, %v1673
      %v2422 = vpop.permute.xlu0 %2421
      %2425 = vset.pattern.permute.xlu0 0
      %2426 = vperm.xlu0 %2425, %v1674
      %v2427 = vpop.permute.xlu0 %2426
      %2430 = vset.pattern.permute.xlu0 0
      %2431 = vperm.xlu0 %2430, %v1675
      %v2432 = vpop.permute.xlu0 %2431
      %2435 = vset.pattern.permute.xlu0 0
      %2436 = vperm.xlu0 %2435, %v1676
      %v2437 = vpop.permute.xlu0 %2436
      %2440 = vset.pattern.permute.xlu0 0
      %2441 = vperm.xlu0 %2440, %v1677
      %v2442 = vpop.permute.xlu0 %2441
      %2445 = vset.pattern.permute.xlu0 0
      %2446 = vperm.xlu0 %2445, %v1678
      %v2447 = vpop.permute.xlu0 %2446
      %2450 = vset.pattern.permute.xlu0 0
      %2451 = vperm.xlu0 %2450, %v1679
      %v2452 = vpop.permute.xlu0 %2451
      %2455 = vset.pattern.permute.xlu0 0
      %2456 = vperm.xlu0 %2455, %v1680
      %v2457 = vpop.permute.xlu0 %2456
      %2460 = vset.pattern.permute.xlu0 0
      %2461 = vperm.xlu0 %2460, %v1681
      %v2462 = vpop.permute.xlu0 %2461
      %2465 = vset.pattern.permute.xlu0 0
      %2466 = vperm.xlu0 %2465, %v1682
      %v2467 = vpop.permute.xlu0 %2466
      %2470 = vset.pattern.permute.xlu0 0
      %2471 = vperm.xlu0 %2470, %v1683
      %v2472 = vpop.permute.xlu0 %2471
      %2475 = vset.pattern.permute.xlu0 0
      %2476 = vperm.xlu0 %2475, %v1684
      %v2477 = vpop.permute.xlu0 %2476
      %2480 = vset.pattern.permute.xlu0 0
      %2481 = vperm.xlu0 %2480, %v1685
      %v2482 = vpop.permute.xlu0 %2481
      %2485 = vset.pattern.permute.xlu0 0
      %2486 = vperm.xlu0 %2485, %v1686
      %v2487 = vpop.permute.xlu0 %2486
      %2490 = vset.pattern.permute.xlu0 0
      %2491 = vperm.xlu0 %2490, %v1687
      %v2492 = vpop.permute.xlu0 %2491
      %2495 = vset.pattern.permute.xlu0 0
      %2496 = vperm.xlu0 %2495, %v1688
      %v2497 = vpop.permute.xlu0 %2496
      %2500 = vset.pattern.permute.xlu0 0
      %2501 = vperm.xlu0 %2500, %v1689
      %v2502 = vpop.permute.xlu0 %2501
      %2505 = vset.pattern.permute.xlu0 0
      %2506 = vperm.xlu0 %2505, %v1690
      %v2507 = vpop.permute.xlu0 %2506
      %2510 = vset.pattern.permute.xlu0 0
      %2511 = vperm.xlu0 %2510, %v1691
      %v2512 = vpop.permute.xlu0 %2511
      %2515 = vset.pattern.permute.xlu0 0
      %2516 = vperm.xlu0 %2515, %v1692
      %v2517 = vpop.permute.xlu0 %2516
      %2520 = vset.pattern.permute.xlu0 0
      %2521 = vperm.xlu0 %2520, %v1693
      %v2522 = vpop.permute.xlu0 %2521
      %2525 = vset.pattern.permute.xlu0 0
      %2526 = vperm.xlu0 %2525, %v1694
      %v2527 = vpop.permute.xlu0 %2526
      %2530 = vset.pattern.permute.xlu0 0
      %2531 = vperm.xlu0 %2530, %v1695
      %v2532 = vpop.permute.xlu0 %2531
      %2535 = vset.pattern.permute.xlu0 0
      %2536 = vperm.xlu0 %2535, %v1696
      %v2537 = vpop.permute.xlu0 %2536
      %2540 = vset.pattern.permute.xlu0 0
      %2541 = vperm.xlu0 %2540, %v1697
      %v2542 = vpop.permute.xlu0 %2541
      %2545 = vset.pattern.permute.xlu0 0
      %2546 = vperm.xlu0 %2545, %v1698
      %v2547 = vpop.permute.xlu0 %2546
      %2550 = vset.pattern.permute.xlu0 0
      %2551 = vperm.xlu0 %2550, %v1699
      %v2552 = vpop.permute.xlu0 %2551
      %2555 = vset.pattern.permute.xlu0 0
      %2556 = vperm.xlu0 %2555, %v1700
      %v2557 = vpop.permute.xlu0 %2556
      %v2559 = vadd.f32 %v2091, %v2172
      %v2560 = vadd.f32 %v2092, %v2177
      %v2561 = vadd.f32 %v2093, %v2182
      %v2562 = vadd.f32 %v2094, %v2187
      %v2563 = vadd.f32 %v2095, %v2192
      %v2564 = vadd.f32 %v2096, %v2197
      %v2565 = vadd.f32 %v2097, %v2202
      %v2566 = vadd.f32 %v2098, %v2207
      %v2567 = vadd.f32 %v2099, %v2212
      %v2568 = vadd.f32 %v2100, %v2217
      %v2569 = vadd.f32 %v2101, %v2222
      %v2570 = vadd.f32 %v2102, %v2227
      %v2571 = vadd.f32 %v2103, %v2232
      %v2572 = vadd.f32 %v2104, %v2237
      %v2573 = vadd.f32 %v2105, %v2242
      %v2574 = vadd.f32 %v2106, %v2247
      %v2575 = vadd.f32 %v2107, %v2252
      %v2576 = vadd.f32 %v2108, %v2257
      %v2577 = vadd.f32 %v2109, %v2262
      %v2578 = vadd.f32 %v2110, %v2267
      %v2579 = vadd.f32 %v2111, %v2272
      %v2580 = vadd.f32 %v2112, %v2277
      %v2581 = vadd.f32 %v2113, %v2282
      %v2582 = vadd.f32 %v2114, %v2287
      %v2583 = vadd.f32 %v2115, %v2292
      %v2584 = vadd.f32 %v2116, %v2297
      %v2585 = vadd.f32 %v2117, %v2302
      %v2586 = vadd.f32 %v2118, %v2307
      %v2587 = vadd.f32 %v2119, %v2312
      %v2588 = vadd.f32 %v2120, %v2317
      %v2589 = vadd.f32 %v2121, %v2322
      %v2590 = vadd.f32 %v2122, %v2327
      %v2591 = vadd.f32 %v2123, %v2332
      %v2592 = vadd.f32 %v2124, %v2337
      %v2593 = vadd.f32 %v2125, %v2342
      %v2594 = vadd.f32 %v2126, %v2347
      %v2595 = vadd.f32 %v2127, %v2352
      %v2596 = vadd.f32 %v2128, %v2357
      %v2597 = vadd.f32 %v2129, %v2362
      %v2598 = vadd.f32 %v2130, %v2367
      %v2599 = vadd.f32 %v2131, %v2372
      %v2600 = vadd.f32 %v2132, %v2377
      %v2601 = vadd.f32 %v2133, %v2382
      %v2602 = vadd.f32 %v2134, %v2387
      %v2603 = vadd.f32 %v2135, %v2392
      %v2604 = vadd.f32 %v2136, %v2397
      %v2605 = vadd.f32 %v2137, %v2402
      %v2606 = vadd.f32 %v2138, %v2407
      %v2607 = vadd.f32 %v2139, %v2412
      %v2608 = vadd.f32 %v2140, %v2417
      %v2609 = vadd.f32 %v2141, %v2422
      %v2610 = vadd.f32 %v2142, %v2427
      %v2611 = vadd.f32 %v2143, %v2432
      %v2612 = vadd.f32 %v2144, %v2437
      %v2613 = vadd.f32 %v2145, %v2442
      %v2614 = vadd.f32 %v2146, %v2447
      %v2615 = vadd.f32 %v2147, %v2452
      %v2616 = vadd.f32 %v2148, %v2457
      %v2617 = vadd.f32 %v2149, %v2462
      %v2618 = vadd.f32 %v2150, %v2467
      %v2619 = vadd.f32 %v2151, %v2472
      %v2620 = vadd.f32 %v2152, %v2477
      %v2621 = vadd.f32 %v2153, %v2482
      %v2622 = vadd.f32 %v2154, %v2487
      %v2623 = vadd.f32 %v2155, %v2492
      %v2624 = vadd.f32 %v2156, %v2497
      %v2625 = vadd.f32 %v2157, %v2502
      %v2626 = vadd.f32 %v2158, %v2507
      %v2627 = vadd.f32 %v2159, %v2512
      %v2628 = vadd.f32 %v2160, %v2517
      %v2629 = vadd.f32 %v2161, %v2522
      %v2630 = vadd.f32 %v2162, %v2527
      %v2631 = vadd.f32 %v2163, %v2532
      %v2632 = vadd.f32 %v2164, %v2537
      %v2633 = vadd.f32 %v2165, %v2542
      %v2634 = vadd.f32 %v2166, %v2547
      %v2635 = vadd.f32 %v2167, %v2552
      %v2636 = vadd.f32 %v2168, %v2557
      %2637 = vst.msk [vmem:[%s216] sm:$0xff] %vm296, %v2559
      %2638 = vst.msk [vmem:[%s216 + $0x8] sm:$0xff] %vm296, %v2560
      %2639 = vst.msk [vmem:[%s216 + $0x10] sm:$0xff] %vm296, %v2561
      %2640 = vst.msk [vmem:[%s216 + $0x18] sm:$0xff] %vm296, %v2562
      %2641 = vst.msk [vmem:[%s216 + $0x20] sm:$0xff] %vm296, %v2563
      %2642 = vst.msk [vmem:[%s216 + $0x28] sm:$0xff] %vm296, %v2564
      %2643 = vst.msk [vmem:[%s216 + $0x30] sm:$0xff] %vm296, %v2565
      %2644 = vst.msk [vmem:[%s216 + $0x38] sm:$0xff] %vm296, %v2566
      %2645 = vst.msk [vmem:[%s216 + $0x40] sm:$0xff] %vm296, %v2567
      %2646 = vst.msk [vmem:[%s216 + $0x48] sm:$0xff] %vm296, %v2568
      %2647 = vst.msk [vmem:[%s216 + $0x50] sm:$0xff] %vm296, %v2569
      %2648 = vst.msk [vmem:[%s216 + $0x58] sm:$0xff] %vm296, %v2570
      %2649 = vst.msk [vmem:[%s216 + $0x60] sm:$0xff] %vm296, %v2571
      %2650 = vst.msk [vmem:[%s216 + $0x68] sm:$0xff] %vm296, %v2572
      %2651 = vst.msk [vmem:[%s216 + $0x70] sm:$0xff] %vm296, %v2573
      %2652 = vst.msk [vmem:[%s216 + $0x78] sm:$0xff] %vm296, %v2574
      %2653 = vst.msk [vmem:[%s216 + $0x80] sm:$0xff] %vm296, %v2575
      %2654 = vst.msk [vmem:[%s216 + $0x88] sm:$0xff] %vm296, %v2576
      %2655 = vst.msk [vmem:[%s216 + $0x90] sm:$0xff] %vm296, %v2577
      %2656 = vst.msk [vmem:[%s216 + $0x98] sm:$0xff] %vm296, %v2578
      %2657 = vst.msk [vmem:[%s216 + $0xa0] sm:$0xff] %vm296, %v2579
      %2658 = vst.msk [vmem:[%s216 + $0xa8] sm:$0xff] %vm296, %v2580
      %2659 = vst.msk [vmem:[%s216 + $0xb0] sm:$0xff] %vm296, %v2581
      %2660 = vst.msk [vmem:[%s216 + $0xb8] sm:$0xff] %vm296, %v2582
      %2661 = vst.msk [vmem:[%s216 + $0xc0] sm:$0xff] %vm296, %v2583
      %2662 = vst.msk [vmem:[%s216 + $0xc8] sm:$0xff] %vm296, %v2584
      %2663 = vst.msk [vmem:[%s216 + $0xd0] sm:$0xff] %vm296, %v2585
      %2664 = vst.msk [vmem:[%s216 + $0xd8] sm:$0xff] %vm296, %v2586
      %2665 = vst.msk [vmem:[%s216 + $0xe0] sm:$0xff] %vm296, %v2587
      %2666 = vst.msk [vmem:[%s216 + $0xe8] sm:$0xff] %vm296, %v2588
      %2667 = vst.msk [vmem:[%s216 + $0xf0] sm:$0xff] %vm296, %v2589
      %2668 = vst.msk [vmem:[%s216 + $0xf8] sm:$0xff] %vm296, %v2590
      %2669 = vst.msk [vmem:[%s216 + $0x100] sm:$0xff] %vm296, %v2591
      %2670 = vst.msk [vmem:[%s216 + $0x108] sm:$0xff] %vm296, %v2592
      %2671 = vst.msk [vmem:[%s216 + $0x110] sm:$0xff] %vm296, %v2593
      %2672 = vst.msk [vmem:[%s216 + $0x118] sm:$0xff] %vm296, %v2594
      %2673 = vst.msk [vmem:[%s216 + $0x120] sm:$0xff] %vm296, %v2595
      %2674 = vst.msk [vmem:[%s216 + $0x128] sm:$0xff] %vm296, %v2596
      %2675 = vst.msk [vmem:[%s216 + $0x130] sm:$0xff] %vm296, %v2597
      %2676 = vst.msk [vmem:[%s216 + $0x138] sm:$0xff] %vm296, %v2598
      %2677 = vst.msk [vmem:[%s216 + $0x140] sm:$0xff] %vm296, %v2599
      %2678 = vst.msk [vmem:[%s216 + $0x148] sm:$0xff] %vm296, %v2600
      %2679 = vst.msk [vmem:[%s216 + $0x150] sm:$0xff] %vm296, %v2601
      %2680 = vst.msk [vmem:[%s216 + $0x158] sm:$0xff] %vm296, %v2602
      %2681 = vst.msk [vmem:[%s216 + $0x160] sm:$0xff] %vm296, %v2603
      %2682 = vst.msk [vmem:[%s216 + $0x168] sm:$0xff] %vm296, %v2604
      %2683 = vst.msk [vmem:[%s216 + $0x170] sm:$0xff] %vm296, %v2605
      %2684 = vst.msk [vmem:[%s216 + $0x178] sm:$0xff] %vm296, %v2606
      %2685 = vst.msk [vmem:[%s216 + $0x180] sm:$0xff] %vm296, %v2607
      %2686 = vst.msk [vmem:[%s216 + $0x188] sm:$0xff] %vm296, %v2608
      %2687 = vst.msk [vmem:[%s216 + $0x190] sm:$0xff] %vm296, %v2609
      %2688 = vst.msk [vmem:[%s216 + $0x198] sm:$0xff] %vm296, %v2610
      %2689 = vst.msk [vmem:[%s216 + $0x1a0] sm:$0xff] %vm296, %v2611
      %2690 = vst.msk [vmem:[%s216 + $0x1a8] sm:$0xff] %vm296, %v2612
      %2691 = vst.msk [vmem:[%s216 + $0x1b0] sm:$0xff] %vm296, %v2613
      %2692 = vst.msk [vmem:[%s216 + $0x1b8] sm:$0xff] %vm296, %v2614
      %2693 = vst.msk [vmem:[%s216 + $0x1c0] sm:$0xff] %vm296, %v2615
      %2694 = vst.msk [vmem:[%s216 + $0x1c8] sm:$0xff] %vm296, %v2616
      %2695 = vst.msk [vmem:[%s216 + $0x1d0] sm:$0xff] %vm296, %v2617
      %2696 = vst.msk [vmem:[%s216 + $0x1d8] sm:$0xff] %vm296, %v2618
      %2697 = vst.msk [vmem:[%s216 + $0x1e0] sm:$0xff] %vm296, %v2619
      %2698 = vst.msk [vmem:[%s216 + $0x1e8] sm:$0xff] %vm296, %v2620
      %2699 = vst.msk [vmem:[%s216 + $0x1f0] sm:$0xff] %vm296, %v2621
      %2700 = vst.msk [vmem:[%s216 + $0x1f8] sm:$0xff] %vm296, %v2622
      %2701 = vst.msk [vmem:[%s216 + $0x200] sm:$0xff] %vm296, %v2623
      %2702 = vst.msk [vmem:[%s216 + $0x208] sm:$0xff] %vm296, %v2624
      %2703 = vst.msk [vmem:[%s216 + $0x210] sm:$0xff] %vm296, %v2625
      %2704 = vst.msk [vmem:[%s216 + $0x218] sm:$0xff] %vm296, %v2626
      %2705 = vst.msk [vmem:[%s216 + $0x220] sm:$0xff] %vm296, %v2627
      %2706 = vst.msk [vmem:[%s216 + $0x228] sm:$0xff] %vm296, %v2628
      %2707 = vst.msk [vmem:[%s216 + $0x230] sm:$0xff] %vm296, %v2629
      %2708 = vst.msk [vmem:[%s216 + $0x238] sm:$0xff] %vm296, %v2630
      %2709 = vst.msk [vmem:[%s216 + $0x240] sm:$0xff] %vm296, %v2631
      %2710 = vst.msk [vmem:[%s216 + $0x248] sm:$0xff] %vm296, %v2632
      %2711 = vst.msk [vmem:[%s216 + $0x250] sm:$0xff] %vm296, %v2633
      %2712 = vst.msk [vmem:[%s216 + $0x258] sm:$0xff] %vm296, %v2634
      %2713 = vst.msk [vmem:[%s216 + $0x260] sm:$0xff] %vm296, %v2635
      %2714 = vst.msk [vmem:[%s216 + $0x268] sm:$0xff] %vm296, %v2636
      %s2715 = smul.u32 78, %s14
      %p2716 = scmp.lt.s32.totalorder %s2715, 155
      %s2717 = scalar_select %p2716, %s2715, 155
      %s2718 = smul.addr %s2717, 8
      %s2719 = scalar_lea.vmem %s3, %s2718
      // Predicated region
      $region33: #{tpu_custom_call.1} parent=31 // pred_check
        %p2720 = pneg %p110
      $region34: #{tpu_custom_call.1} parent=31 // pred_check_branch
        %2722 = sbr.rel (%p2720) target = $region36
      $region35: #{tpu_custom_call.1} parent=31 // pred_region
        %s2723 = smul.u32 78, %s14
      $region36: #{tpu_custom_call.1} parent=31 // pred_fallthru
        _
    $region32: #{tpu_custom_call.1} parent=5 // pred_fallthru
      _
    %p2724 = scmp.le.s32.totalorder 2, %s9
    // Predicated region
    $region37: #{tpu_custom_call.1} parent=5 // pred_check
      %p2725 = pneg %p2724
    $region38: #{tpu_custom_call.1} parent=5 // pred_check_branch
      %2727 = sbr.rel (%p2725) target = $region40
    $region39: #{tpu_custom_call.1} parent=5 // pred_region
      %s2728 = ssub.s32 %s9, 2
      // Predicated region
      $region41: #{tpu_custom_call.1} parent=39 // pred_check
        %p2729 = pneg %p116
      $region42: #{tpu_custom_call.1} parent=39 // pred_check_branch
        %2731 = sbr.rel (%p2729) target = $region44
      $region43: #{tpu_custom_call.1} parent=39 // pred_region
        %s2732 = smul.u32 78, %s15
        %p2733 = scmp.lt.s32.totalorder %s2732, 155
        %s2734 = scalar_select %p2733, %s2732, 155
        %s2735 = smul.addr %s2734, 8
        %s2736 = scalar_lea.vmem %s3, %s2735
      $region44: #{tpu_custom_call.1} parent=39 // pred_fallthru
        _
    $region40: #{tpu_custom_call.1} parent=5 // pred_fallthru
      _
  $region6: #{tpu_custom_call.1} parent=0 // loop_footer
    %s13 = sadd.s32 1, %s9
  $region7: #{tpu_custom_call.1} parent=0 // loop_footer_branch
    %8 = sbr.rel target = $region3
  $region8: #{tpu_custom_call.1} parent=0 // loop_exit
    _

</llo_original>
